<compile_context>
chip_gen: v7x
topology: tpu7x:2x2x1
jax: 0.10.0
libtpu: 0.0.40
codegen_flags: <defaults>
</compile_context>

<pallas_src>
import functools

import jax
import jax.numpy as jnp
from jax.experimental import pallas as pl
from jax.experimental.pallas import tpu as pltpu


_VMEM = pl.BlockSpec(memory_space=pltpu.MemorySpace.VMEM)
_ANY = pl.BlockSpec(memory_space=pl.ANY)


# ----------------------------------------------------------------------------
# In-kernel helpers (fully unrolled; T is small & static)
# ----------------------------------------------------------------------------
def _bilstm_merged_layer(xcomb, slab_ref, Tl, B, H, Din):
    """Merged fwd+bwd LSTM layer.

    xcomb:   (Tl*B, 2*Din) value; row-block s = [x(t=s) | x(t=Tl-1-s)].
    slab_ref: packed weights: rows [0:2Din] input proj, [2Din:2Din+2H] block-diag
              recurrent proj, [2Din+2H] bias row.  256 = 8H lanes, gate-interleaved
              columns [i_f, i_b, f_f, f_b, g_f, g_b, o_f, o_b].
    Returns list h_steps, h_steps[s] = (B, 2H) = [h_fwd(time s) | h_bwd(time Tl-1-s)].
    """
    two_din = 2 * Din
    w_in = slab_ref[0:two_din, :]                               # (2Din, 8H)
    w_hh = slab_ref[two_din:two_din + 2 * H, :]                 # (2H, 8H) block-diag
    b = slab_ref[two_din + 2 * H:two_din + 2 * H + 1, :]        # (1, 8H)

    # Hoisted input projection: ONE lane-dense matmul for both directions.
    gx = jnp.dot(xcomb, w_in, preferred_element_type=jnp.float32) + b   # (Tl*B, 8H)

    hcat = jnp.zeros((B, 2 * H), jnp.float32)                   # [hf | hb]
    ccat = jnp.zeros((B, 2 * H), jnp.float32)
    h_steps = []
    for s in range(Tl):
        # One 256-lane recurrent MXU push covering both directions.
        g = gx[s * B:(s + 1) * B, :] + jnp.dot(
            hcat, w_hh, preferred_element_type=jnp.float32)     # (B, 8H)
        # Full-vreg nonlinearities: 1 sigmoid + 1 tanh for both directions.
        sig = jax.nn.sigmoid(g)
        th = jnp.tanh(g)
        i_cat = sig[:, 0 * H:2 * H]
        f_cat = sig[:, 2 * H:4 * H]
        g_cat = th[:, 4 * H:6 * H]
        o_cat = sig[:, 6 * H:8 * H]
        ccat = f_cat * ccat + i_cat * g_cat
        hcat = o_cat * jnp.tanh(ccat)
        h_steps.append(hcat)
    return h_steps


def _bidir_outputs(h_steps, H):
    """BiLSTM output at original time t: [h_fwd(t) | h_bwd(t)]."""
    Tl = len(h_steps)
    return [jnp.concatenate([h_steps[t][:, 0:H], h_steps[Tl - 1 - t][:, H:2 * H]],
                            axis=1) for t in range(Tl)]


def _pool2(outs):
    """max_pool1d(kernel=2) over time, fused on register-resident values."""
    return [jnp.maximum(outs[2 * k], outs[2 * k + 1]) for k in range(len(outs) // 2)]


def _make_comb(blocks):
    """blocks[t]: (B, Din) in time order -> (Tl*B, 2*Din) [x(s) | x(Tl-1-s)] stack."""
    Tl = len(blocks)
    return jnp.concatenate(
        [jnp.concatenate([blocks[s], blocks[Tl - 1 - s]], axis=1) for s in range(Tl)],
        axis=0)


# ----------------------------------------------------------------------------
# The single fused kernel: 3 BiLSTM layers + 2 maxpools + last-step Linear
# ----------------------------------------------------------------------------
def _model1_kernel(xc_ref, s0_ref, s1_hbm, s2_hbm, wd_ref, bd_ref, out_ref,
                   s1_buf, s2_buf, sems, *, T, B, H, D):
    # Prefetch layer-1/2 weight slabs from HBM behind the layer-0 compute.
    cp1 = pltpu.make_async_copy(s1_hbm, s1_buf, sems.at[0])
    cp2 = pltpu.make_async_copy(s2_hbm, s2_buf, sems.at[1])
    cp1.start()
    cp2.start()

    # ---- layer 0: BiLSTM + maxpool(2) -----------------------------------
    h0 = _bilstm_merged_layer(xc_ref[...], s0_ref, T, B, H, D)
    p0 = _pool2(_bidir_outputs(h0, H))                  # len T//2 of (B, 2H)

    # ---- layer 1: BiLSTM + maxpool(2) -----------------------------------
    cp1.wait()
    T1 = T // 2
    h1 = _bilstm_merged_layer(_make_comb(p0), s1_buf, T1, B, H, 2 * H)
    p1 = _pool2(_bidir_outputs(h1, H))                  # len T//4 of (B, 2H)

    # ---- layer 2: BiLSTM, keep last timestep, fused Linear ---------------
    cp2.wait()
    T2 = T // 4
    h2 = _bilstm_merged_layer(_make_comb(p1), s2_buf, T2, B, H, 2 * H)
    # output[:, -1, :] = [h_fwd(T2-1) | h_bwd(T2-1)]; h_bwd(T2-1) is the backward
    # chain's first processed step, i.e. h2[0][:, H:2H].
    last = jnp.concatenate([h2[T2 - 1][:, 0:H], h2[0][:, H:2 * H]], axis=1)  # (B, 2H)
    out_ref[...] = (jnp.dot(last, wd_ref[...], preferred_element_type=jnp.float32)
                    + bd_ref[...])


# ----------------------------------------------------------------------------
# Wrapper
# ----------------------------------------------------------------------------
def model_1_forward(x, p):
    """x: (B, T, feature_dim) float32 -> (B, output_dim).

    Semantics: BiLSTM -> maxpool1d(2, time) -> BiLSTM -> maxpool1d(2, time)
               -> BiLSTM -> last timestep -> Linear.
    (num_embedding=0 path; LSTM dropout with num_layers=1 is a forward no-op.)
    """
    B, T, D = x.shape
    assert T % 4 == 0, "two max_pool1d(kernel=2) stages require T % 4 == 0"
    H = p["slab0"].shape[1] // 8
    O = p["dense_w"].shape[1]

    # Boundary layout work: time-major, and present [x(t) | x(T-1-t)] so the kernel
    # computes both directions' input projections with one matmul.
    xt = jnp.transpose(x, (1, 0, 2))                    # (T, B, D)
    x_comb = jnp.concatenate([xt, xt[::-1]], axis=-1).reshape(T * B, 2 * D)

    kernel = functools.partial(_model1_kernel, T=T, B=B, H=H, D=D)
    return pl.pallas_call(
        kernel,
        out_shape=jax.ShapeDtypeStruct((B, O), jnp.float32),
        in_specs=[_VMEM, _VMEM, _ANY, _ANY, _VMEM, _VMEM],
        out_specs=_VMEM,
        scratch_shapes=[
            pltpu.VMEM(p["slab1"].shape, jnp.float32),
            pltpu.VMEM(p["slab2"].shape, jnp.float32),
            pltpu.SemaphoreType.DMA((2,)),
        ],
    )(x_comb, p["slab0"], p["slab1"], p["slab2"], p["dense_w"], p["dense_b"])


# ----------------------------------------------------------------------------
# Parameter init (PyTorch-style U(-1/sqrt(H), 1/sqrt(H))) + host-side packing
# ----------------------------------------------------------------------------
def _init_lstm_dir(key, in_dim, hidden):
    k = 1.0 / (hidden ** 0.5)
    k1, k2, k3, k4 = jax.random.split(key, 4)
    w_ih = jax.random.uniform(k1, (in_dim, 4 * hidden), jnp.float32, -k, k)
    w_hh = jax.random.uniform(k2, (hidden, 4 * hidden), jnp.float32, -k, k)
    b_ih = jax.random.uniform(k3, (1, 4 * hidden), jnp.float32, -k, k)
    b_hh = jax.random.uniform(k4, (1, 4 * hidden), jnp.float32, -k, k)
    return {"w_ih": w_ih, "w_hh": w_hh, "b": b_ih + b_hh}


def _interleave_gates(a, b, H):
    """a, b: (R, 4H) gate order [i,f,g,o] -> (R, 8H) blocks [a_i,b_i,a_f,b_f,...]."""
    R = a.shape[0]
    a4 = a.reshape(R, 4, 1, H)
    b4 = b.reshape(R, 4, 1, H)
    return jnp.concatenate([a4, b4], axis=2).reshape(R, 8 * H)


def _pack_layer(pf, pb, Din, H):
    """One (rows, 8H) slab: [ fwd/bwd input proj ; block-diag recurrent ; bias ]."""
    z_in = jnp.zeros_like(pf["w_ih"])
    w_in = jnp.concatenate([_interleave_gates(pf["w_ih"], z_in, H),
                            _interleave_gates(z_in, pb["w_ih"], H)], axis=0)
    z_hh = jnp.zeros_like(pf["w_hh"])
    w_hh = jnp.concatenate([_interleave_gates(pf["w_hh"], z_hh, H),
                            _interleave_gates(z_hh, pb["w_hh"], H)], axis=0)
    b = _interleave_gates(pf["b"], pb["b"], H)
    slab = jnp.concatenate([w_in, w_hh, b], axis=0)     # (2Din + 2H + 1, 8H)
    pad = (-slab.shape[0]) % 8
    if pad:
        slab = jnp.concatenate([slab, jnp.zeros((pad, 8 * H), jnp.float32)], axis=0)
    return slab


def init_params(key, feature_dim, hidden, output_dim):
    keys = jax.random.split(key, 8)
    nd = 2  # bidirectional
    l0f = _init_lstm_dir(keys[0], feature_dim, hidden)
    l0b = _init_lstm_dir(keys[1], feature_dim, hidden)
    l1f = _init_lstm_dir(keys[2], nd * hidden, hidden)
    l1b = _init_lstm_dir(keys[3], nd * hidden, hidden)
    l2f = _init_lstm_dir(keys[4], nd * hidden, hidden)
    l2b = _init_lstm_dir(keys[5], nd * hidden, hidden)
    kd = 1.0 / ((nd * hidden) ** 0.5)
    dense_w = jax.random.uniform(keys[6], (nd * hidden, output_dim), jnp.float32, -kd, kd)
    dense_b = jax.random.uniform(keys[7], (1, output_dim), jnp.float32, -kd, kd)

    packed = {
        "slab0": _pack_layer(l0f, l0b, feature_dim, hidden),
        "slab1": _pack_layer(l1f, l1b, nd * hidden, hidden),
        "slab2": _pack_layer(l2f, l2b, nd * hidden, hidden),
        "dense_w": dense_w, "dense_b": dense_b,
    }
    raw = {"l0": (l0f, l0b), "l1": (l1f, l1b), "l2": (l2f, l2b),
           "dense_w": dense_w, "dense_b": dense_b}
    return packed, raw


# ----------------------------------------------------------------------------
# Pure-JAX reference (high precision) for a correctness check
# ----------------------------------------------------------------------------
def _ref_lstm_dir(x, p, H, reverse):
    B, T, _ = x.shape
    P = jax.lax.Precision.HIGHEST
    h = jnp.zeros((B, H), jnp.float32)
    c = jnp.zeros((B, H), jnp.float32)
    hs = []
    times = range(T - 1, -1, -1) if reverse else range(T)
    for t in times:
        g = (jnp.dot(x[:, t, :], p["w_ih"], precision=P) + p["b"]
             + jnp.dot(h, p["w_hh"], precision=P))
        i = jax.nn.sigmoid(g[:, 0:H]); f = jax.nn.sigmoid(g[:, H:2 * H])
        gg = jnp.tanh(g[:, 2 * H:3 * H]); o = jax.nn.sigmoid(g[:, 3 * H:4 * H])
        c = f * c + i * gg
        h = o * jnp.tanh(c)
        hs.append(h)
    if reverse:
        hs = hs[::-1]
    return jnp.stack(hs, axis=1)


def _ref_bilstm(x, pf, pb, H):
    return jnp.concatenate([_ref_lstm_dir(x, pf, H, False),
                            _ref_lstm_dir(x, pb, H, True)], axis=-1)


def _ref_pool2(x):
    B, T, C = x.shape
    return jnp.max(x.reshape(B, T // 2, 2, C), axis=2)


def model_1_reference(x, raw, H):
    h = _ref_pool2(_ref_bilstm(x, *raw["l0"], H))
    h = _ref_pool2(_ref_bilstm(h, *raw["l1"], H))
    h = _ref_bilstm(h, *raw["l2"], H)[:, -1, :]
    return jnp.dot(h, raw["dense_w"], precision=jax.lax.Precision.HIGHEST) + raw["dense_b"]


# ----------------------------------------------------------------------------
if __name__ == "__main__":
    B, T = 2, 8
    FEATURE_DIM, HIDDEN, OUTPUT_DIM = 16, 32, 2

    key = jax.random.PRNGKey(0)
    kx, kp = jax.random.split(key)
    x = jax.random.normal(kx, (B, T, FEATURE_DIM), dtype=jnp.float32)
    params, raw = init_params(kp, FEATURE_DIM, HIDDEN, OUTPUT_DIM)

    out = jax.jit(model_1_forward)(x, params)
    out = jax.block_until_ready(out)
    assert out.shape == (B, OUTPUT_DIM), out.shape

    ref = jax.jit(functools.partial(model_1_reference, H=HIDDEN))(x, raw)
    ref = jax.block_until_ready(ref)
    err = float(jnp.max(jnp.abs(out - ref)))
    if err > 2e-3:
        raise AssertionError(f"kernel/reference mismatch: max abs err = {err}")

    print("KERNEL_OK")
</pallas_src>

<mosaic_0001>
module attributes {stable_mosaic.version = 11 : i64} {
  func.func @_model1_kernel(%arg0: memref<16x32xf32, #tpu.memory_space<vmem>>, %arg1: memref<104x256xf32, #tpu.memory_space<vmem>>, %arg2: memref<200x256xf32, #tpu.memory_space<any>>, %arg3: memref<200x256xf32, #tpu.memory_space<any>>, %arg4: memref<64x2xf32, #tpu.memory_space<vmem>>, %arg5: memref<1x2xf32, #tpu.memory_space<vmem>>, %arg6: memref<2x2xf32, #tpu.memory_space<vmem>>, %arg7: memref<200x256xf32, #tpu.memory_space<vmem>>, %arg8: memref<200x256xf32, #tpu.memory_space<vmem>>, %arg9: memref<2x!tpu.dma_semaphore, #tpu.memory_space<semaphore_mem>>) attributes {dimension_semantics = [], scalar_prefetch = 0 : i64, scratch_operands = 3 : i64, tpu.core_type = #tpu.core_type<tc>} {
    %c0_i32 = arith.constant 0 : i32
    %0 = tpu.memref_slice %arg9[%c0_i32] : memref<2x!tpu.dma_semaphore, #tpu.memory_space<semaphore_mem>> -> memref<1x!tpu.dma_semaphore, #tpu.memory_space<semaphore_mem>>
    %1 = tpu.memref_squeeze %0 : memref<1x!tpu.dma_semaphore, #tpu.memory_space<semaphore_mem>> -> memref<!tpu.dma_semaphore, #tpu.memory_space<semaphore_mem>>
    tpu.enqueue_dma source(%arg2 : memref<200x256xf32, #tpu.memory_space<any>>) target(%arg7 : memref<200x256xf32, #tpu.memory_space<vmem>>) target_semaphore(%1 : memref<!tpu.dma_semaphore, #tpu.memory_space<semaphore_mem>>)
    %c1_i32 = arith.constant 1 : i32
    %2 = tpu.memref_slice %arg9[%c1_i32] : memref<2x!tpu.dma_semaphore, #tpu.memory_space<semaphore_mem>> -> memref<1x!tpu.dma_semaphore, #tpu.memory_space<semaphore_mem>>
    %3 = tpu.memref_squeeze %2 : memref<1x!tpu.dma_semaphore, #tpu.memory_space<semaphore_mem>> -> memref<!tpu.dma_semaphore, #tpu.memory_space<semaphore_mem>>
    tpu.enqueue_dma source(%arg3 : memref<200x256xf32, #tpu.memory_space<any>>) target(%arg8 : memref<200x256xf32, #tpu.memory_space<vmem>>) target_semaphore(%3 : memref<!tpu.dma_semaphore, #tpu.memory_space<semaphore_mem>>)
    %c0 = arith.constant 0 : index
    %c0_0 = arith.constant 0 : index
    %4 = vector.load %arg0[%c0, %c0_0] : memref<16x32xf32, #tpu.memory_space<vmem>>, vector<16x32xf32>
    %c0_1 = arith.constant 0 : index
    %c0_2 = arith.constant 0 : index
    %5 = vector.load %arg1[%c0_1, %c0_2] : memref<104x256xf32, #tpu.memory_space<vmem>>, vector<32x256xf32>
    %c32 = arith.constant 32 : index
    %c0_3 = arith.constant 0 : index
    %6 = vector.load %arg1[%c32, %c0_3] : memref<104x256xf32, #tpu.memory_space<vmem>>, vector<64x256xf32>
    %c96 = arith.constant 96 : index
    %c0_4 = arith.constant 0 : index
    %7 = vector.load %arg1[%c96, %c0_4] : memref<104x256xf32, #tpu.memory_space<vmem>>, vector<1x256xf32>
    %cst = arith.constant dense<0.000000e+00> : vector<16x256xf32>
    %8 = tpu.matmul %4, %5, %cst {dimension_numbers = #tpu.dot_dimension_numbers<[1], [0], [0], [1], [0, 0, 1, 1], [], []>} : vector<16x32xf32>, vector<32x256xf32>, vector<16x256xf32> -> vector<16x256xf32>
    %9 = vector.broadcast %7 : vector<1x256xf32> to vector<16x256xf32>
    %10 = arith.addf %8, %9 : vector<16x256xf32>
    %cst_5 = arith.constant 0.000000e+00 : f32
    %11 = vector.broadcast %cst_5 : f32 to vector<2x64xf32>
    %cst_6 = arith.constant 0.000000e+00 : f32
    %12 = vector.broadcast %cst_6 : f32 to vector<2x64xf32>
    %13 = vector.extract_strided_slice %10 {offsets = [0, 0], sizes = [2, 256], strides = [1, 1]} : vector<16x256xf32> to vector<2x256xf32>
    %cst_7 = arith.constant dense<0.000000e+00> : vector<2x256xf32>
    %14 = tpu.matmul %11, %6, %cst_7 {dimension_numbers = #tpu.dot_dimension_numbers<[1], [0], [0], [1], [0, 0, 1, 1], [], []>} : vector<2x64xf32>, vector<64x256xf32>, vector<2x256xf32> -> vector<2x256xf32>
    %15 = arith.addf %13, %14 : vector<2x256xf32>
    %16 = arith.negf %15 : vector<2x256xf32>
    %17 = math.exp %16 : vector<2x256xf32>
    %cst_8 = arith.constant 1.000000e+00 : f32
    %18 = vector.broadcast %cst_8 : f32 to vector<2x256xf32>
    %19 = arith.addf %18, %17 : vector<2x256xf32>
    %20 = arith.divf %18, %19 : vector<2x256xf32>
    %21 = math.tanh %15 : vector<2x256xf32>
    %22 = vector.extract_strided_slice %20 {offsets = [0, 0], sizes = [2, 64], strides = [1, 1]} : vector<2x256xf32> to vector<2x64xf32>
    %23 = vector.extract_strided_slice %20 {offsets = [0, 64], sizes = [2, 64], strides = [1, 1]} : vector<2x256xf32> to vector<2x64xf32>
    %24 = vector.extract_strided_slice %21 {offsets = [0, 128], sizes = [2, 64], strides = [1, 1]} : vector<2x256xf32> to vector<2x64xf32>
    %25 = vector.extract_strided_slice %20 {offsets = [0, 192], sizes = [2, 64], strides = [1, 1]} : vector<2x256xf32> to vector<2x64xf32>
    %26 = arith.mulf %23, %12 : vector<2x64xf32>
    %27 = arith.mulf %22, %24 : vector<2x64xf32>
    %28 = arith.addf %26, %27 : vector<2x64xf32>
    %29 = math.tanh %28 : vector<2x64xf32>
    %30 = arith.mulf %25, %29 : vector<2x64xf32>
    %31 = vector.extract_strided_slice %10 {offsets = [2, 0], sizes = [2, 256], strides = [1, 1]} : vector<16x256xf32> to vector<2x256xf32>
    %cst_9 = arith.constant dense<0.000000e+00> : vector<2x256xf32>
    %32 = tpu.matmul %30, %6, %cst_9 {dimension_numbers = #tpu.dot_dimension_numbers<[1], [0], [0], [1], [0, 0, 1, 1], [], []>} : vector<2x64xf32>, vector<64x256xf32>, vector<2x256xf32> -> vector<2x256xf32>
    %33 = arith.addf %31, %32 : vector<2x256xf32>
    %34 = arith.negf %33 : vector<2x256xf32>
    %35 = math.exp %34 : vector<2x256xf32>
    %cst_10 = arith.constant 1.000000e+00 : f32
    %36 = vector.broadcast %cst_10 : f32 to vector<2x256xf32>
    %37 = arith.addf %36, %35 : vector<2x256xf32>
    %38 = arith.divf %36, %37 : vector<2x256xf32>
    %39 = math.tanh %33 : vector<2x256xf32>
    %40 = vector.extract_strided_slice %38 {offsets = [0, 0], sizes = [2, 64], strides = [1, 1]} : vector<2x256xf32> to vector<2x64xf32>
    %41 = vector.extract_strided_slice %38 {offsets = [0, 64], sizes = [2, 64], strides = [1, 1]} : vector<2x256xf32> to vector<2x64xf32>
    %42 = vector.extract_strided_slice %39 {offsets = [0, 128], sizes = [2, 64], strides = [1, 1]} : vector<2x256xf32> to vector<2x64xf32>
    %43 = vector.extract_strided_slice %38 {offsets = [0, 192], sizes = [2, 64], strides = [1, 1]} : vector<2x256xf32> to vector<2x64xf32>
    %44 = arith.mulf %41, %28 : vector<2x64xf32>
    %45 = arith.mulf %40, %42 : vector<2x64xf32>
    %46 = arith.addf %44, %45 : vector<2x64xf32>
    %47 = math.tanh %46 : vector<2x64xf32>
    %48 = arith.mulf %43, %47 : vector<2x64xf32>
    %49 = vector.extract_strided_slice %10 {offsets = [4, 0], sizes = [2, 256], strides = [1, 1]} : vector<16x256xf32> to vector<2x256xf32>
    %cst_11 = arith.constant dense<0.000000e+00> : vector<2x256xf32>
    %50 = tpu.matmul %48, %6, %cst_11 {dimension_numbers = #tpu.dot_dimension_numbers<[1], [0], [0], [1], [0, 0, 1, 1], [], []>} : vector<2x64xf32>, vector<64x256xf32>, vector<2x256xf32> -> vector<2x256xf32>
    %51 = arith.addf %49, %50 : vector<2x256xf32>
    %52 = arith.negf %51 : vector<2x256xf32>
    %53 = math.exp %52 : vector<2x256xf32>
    %cst_12 = arith.constant 1.000000e+00 : f32
    %54 = vector.broadcast %cst_12 : f32 to vector<2x256xf32>
    %55 = arith.addf %54, %53 : vector<2x256xf32>
    %56 = arith.divf %54, %55 : vector<2x256xf32>
    %57 = math.tanh %51 : vector<2x256xf32>
    %58 = vector.extract_strided_slice %56 {offsets = [0, 0], sizes = [2, 64], strides = [1, 1]} : vector<2x256xf32> to vector<2x64xf32>
    %59 = vector.extract_strided_slice %56 {offsets = [0, 64], sizes = [2, 64], strides = [1, 1]} : vector<2x256xf32> to vector<2x64xf32>
    %60 = vector.extract_strided_slice %57 {offsets = [0, 128], sizes = [2, 64], strides = [1, 1]} : vector<2x256xf32> to vector<2x64xf32>
    %61 = vector.extract_strided_slice %56 {offsets = [0, 192], sizes = [2, 64], strides = [1, 1]} : vector<2x256xf32> to vector<2x64xf32>
    %62 = arith.mulf %59, %46 : vector<2x64xf32>
    %63 = arith.mulf %58, %60 : vector<2x64xf32>
    %64 = arith.addf %62, %63 : vector<2x64xf32>
    %65 = math.tanh %64 : vector<2x64xf32>
    %66 = arith.mulf %61, %65 : vector<2x64xf32>
    %67 = vector.extract_strided_slice %10 {offsets = [6, 0], sizes = [2, 256], strides = [1, 1]} : vector<16x256xf32> to vector<2x256xf32>
    %cst_13 = arith.constant dense<0.000000e+00> : vector<2x256xf32>
    %68 = tpu.matmul %66, %6, %cst_13 {dimension_numbers = #tpu.dot_dimension_numbers<[1], [0], [0], [1], [0, 0, 1, 1], [], []>} : vector<2x64xf32>, vector<64x256xf32>, vector<2x256xf32> -> vector<2x256xf32>
    %69 = arith.addf %67, %68 : vector<2x256xf32>
    %70 = arith.negf %69 : vector<2x256xf32>
    %71 = math.exp %70 : vector<2x256xf32>
    %cst_14 = arith.constant 1.000000e+00 : f32
    %72 = vector.broadcast %cst_14 : f32 to vector<2x256xf32>
    %73 = arith.addf %72, %71 : vector<2x256xf32>
    %74 = arith.divf %72, %73 : vector<2x256xf32>
    %75 = math.tanh %69 : vector<2x256xf32>
    %76 = vector.extract_strided_slice %74 {offsets = [0, 0], sizes = [2, 64], strides = [1, 1]} : vector<2x256xf32> to vector<2x64xf32>
    %77 = vector.extract_strided_slice %74 {offsets = [0, 64], sizes = [2, 64], strides = [1, 1]} : vector<2x256xf32> to vector<2x64xf32>
    %78 = vector.extract_strided_slice %75 {offsets = [0, 128], sizes = [2, 64], strides = [1, 1]} : vector<2x256xf32> to vector<2x64xf32>
    %79 = vector.extract_strided_slice %74 {offsets = [0, 192], sizes = [2, 64], strides = [1, 1]} : vector<2x256xf32> to vector<2x64xf32>
    %80 = arith.mulf %77, %64 : vector<2x64xf32>
    %81 = arith.mulf %76, %78 : vector<2x64xf32>
    %82 = arith.addf %80, %81 : vector<2x64xf32>
    %83 = math.tanh %82 : vector<2x64xf32>
    %84 = arith.mulf %79, %83 : vector<2x64xf32>
    %85 = vector.extract_strided_slice %10 {offsets = [8, 0], sizes = [2, 256], strides = [1, 1]} : vector<16x256xf32> to vector<2x256xf32>
    %cst_15 = arith.constant dense<0.000000e+00> : vector<2x256xf32>
    %86 = tpu.matmul %84, %6, %cst_15 {dimension_numbers = #tpu.dot_dimension_numbers<[1], [0], [0], [1], [0, 0, 1, 1], [], []>} : vector<2x64xf32>, vector<64x256xf32>, vector<2x256xf32> -> vector<2x256xf32>
    %87 = arith.addf %85, %86 : vector<2x256xf32>
    %88 = arith.negf %87 : vector<2x256xf32>
    %89 = math.exp %88 : vector<2x256xf32>
    %cst_16 = arith.constant 1.000000e+00 : f32
    %90 = vector.broadcast %cst_16 : f32 to vector<2x256xf32>
    %91 = arith.addf %90, %89 : vector<2x256xf32>
    %92 = arith.divf %90, %91 : vector<2x256xf32>
    %93 = math.tanh %87 : vector<2x256xf32>
    %94 = vector.extract_strided_slice %92 {offsets = [0, 0], sizes = [2, 64], strides = [1, 1]} : vector<2x256xf32> to vector<2x64xf32>
    %95 = vector.extract_strided_slice %92 {offsets = [0, 64], sizes = [2, 64], strides = [1, 1]} : vector<2x256xf32> to vector<2x64xf32>
    %96 = vector.extract_strided_slice %93 {offsets = [0, 128], sizes = [2, 64], strides = [1, 1]} : vector<2x256xf32> to vector<2x64xf32>
    %97 = vector.extract_strided_slice %92 {offsets = [0, 192], sizes = [2, 64], strides = [1, 1]} : vector<2x256xf32> to vector<2x64xf32>
    %98 = arith.mulf %95, %82 : vector<2x64xf32>
    %99 = arith.mulf %94, %96 : vector<2x64xf32>
    %100 = arith.addf %98, %99 : vector<2x64xf32>
    %101 = math.tanh %100 : vector<2x64xf32>
    %102 = arith.mulf %97, %101 : vector<2x64xf32>
    %103 = vector.extract_strided_slice %10 {offsets = [10, 0], sizes = [2, 256], strides = [1, 1]} : vector<16x256xf32> to vector<2x256xf32>
    %cst_17 = arith.constant dense<0.000000e+00> : vector<2x256xf32>
    %104 = tpu.matmul %102, %6, %cst_17 {dimension_numbers = #tpu.dot_dimension_numbers<[1], [0], [0], [1], [0, 0, 1, 1], [], []>} : vector<2x64xf32>, vector<64x256xf32>, vector<2x256xf32> -> vector<2x256xf32>
    %105 = arith.addf %103, %104 : vector<2x256xf32>
    %106 = arith.negf %105 : vector<2x256xf32>
    %107 = math.exp %106 : vector<2x256xf32>
    %cst_18 = arith.constant 1.000000e+00 : f32
    %108 = vector.broadcast %cst_18 : f32 to vector<2x256xf32>
    %109 = arith.addf %108, %107 : vector<2x256xf32>
    %110 = arith.divf %108, %109 : vector<2x256xf32>
    %111 = math.tanh %105 : vector<2x256xf32>
    %112 = vector.extract_strided_slice %110 {offsets = [0, 0], sizes = [2, 64], strides = [1, 1]} : vector<2x256xf32> to vector<2x64xf32>
    %113 = vector.extract_strided_slice %110 {offsets = [0, 64], sizes = [2, 64], strides = [1, 1]} : vector<2x256xf32> to vector<2x64xf32>
    %114 = vector.extract_strided_slice %111 {offsets = [0, 128], sizes = [2, 64], strides = [1, 1]} : vector<2x256xf32> to vector<2x64xf32>
    %115 = vector.extract_strided_slice %110 {offsets = [0, 192], sizes = [2, 64], strides = [1, 1]} : vector<2x256xf32> to vector<2x64xf32>
    %116 = arith.mulf %113, %100 : vector<2x64xf32>
    %117 = arith.mulf %112, %114 : vector<2x64xf32>
    %118 = arith.addf %116, %117 : vector<2x64xf32>
    %119 = math.tanh %118 : vector<2x64xf32>
    %120 = arith.mulf %115, %119 : vector<2x64xf32>
    %121 = vector.extract_strided_slice %10 {offsets = [12, 0], sizes = [2, 256], strides = [1, 1]} : vector<16x256xf32> to vector<2x256xf32>
    %cst_19 = arith.constant dense<0.000000e+00> : vector<2x256xf32>
    %122 = tpu.matmul %120, %6, %cst_19 {dimension_numbers = #tpu.dot_dimension_numbers<[1], [0], [0], [1], [0, 0, 1, 1], [], []>} : vector<2x64xf32>, vector<64x256xf32>, vector<2x256xf32> -> vector<2x256xf32>
    %123 = arith.addf %121, %122 : vector<2x256xf32>
    %124 = arith.negf %123 : vector<2x256xf32>
    %125 = math.exp %124 : vector<2x256xf32>
    %cst_20 = arith.constant 1.000000e+00 : f32
    %126 = vector.broadcast %cst_20 : f32 to vector<2x256xf32>
    %127 = arith.addf %126, %125 : vector<2x256xf32>
    %128 = arith.divf %126, %127 : vector<2x256xf32>
    %129 = math.tanh %123 : vector<2x256xf32>
    %130 = vector.extract_strided_slice %128 {offsets = [0, 0], sizes = [2, 64], strides = [1, 1]} : vector<2x256xf32> to vector<2x64xf32>
    %131 = vector.extract_strided_slice %128 {offsets = [0, 64], sizes = [2, 64], strides = [1, 1]} : vector<2x256xf32> to vector<2x64xf32>
    %132 = vector.extract_strided_slice %129 {offsets = [0, 128], sizes = [2, 64], strides = [1, 1]} : vector<2x256xf32> to vector<2x64xf32>
    %133 = vector.extract_strided_slice %128 {offsets = [0, 192], sizes = [2, 64], strides = [1, 1]} : vector<2x256xf32> to vector<2x64xf32>
    %134 = arith.mulf %131, %118 : vector<2x64xf32>
    %135 = arith.mulf %130, %132 : vector<2x64xf32>
    %136 = arith.addf %134, %135 : vector<2x64xf32>
    %137 = math.tanh %136 : vector<2x64xf32>
    %138 = arith.mulf %133, %137 : vector<2x64xf32>
    %139 = vector.extract_strided_slice %10 {offsets = [14, 0], sizes = [2, 256], strides = [1, 1]} : vector<16x256xf32> to vector<2x256xf32>
    %cst_21 = arith.constant dense<0.000000e+00> : vector<2x256xf32>
    %140 = tpu.matmul %138, %6, %cst_21 {dimension_numbers = #tpu.dot_dimension_numbers<[1], [0], [0], [1], [0, 0, 1, 1], [], []>} : vector<2x64xf32>, vector<64x256xf32>, vector<2x256xf32> -> vector<2x256xf32>
    %141 = arith.addf %139, %140 : vector<2x256xf32>
    %142 = arith.negf %141 : vector<2x256xf32>
    %143 = math.exp %142 : vector<2x256xf32>
    %cst_22 = arith.constant 1.000000e+00 : f32
    %144 = vector.broadcast %cst_22 : f32 to vector<2x256xf32>
    %145 = arith.addf %144, %143 : vector<2x256xf32>
    %146 = arith.divf %144, %145 : vector<2x256xf32>
    %147 = math.tanh %141 : vector<2x256xf32>
    %148 = vector.extract_strided_slice %146 {offsets = [0, 0], sizes = [2, 64], strides = [1, 1]} : vector<2x256xf32> to vector<2x64xf32>
    %149 = vector.extract_strided_slice %146 {offsets = [0, 64], sizes = [2, 64], strides = [1, 1]} : vector<2x256xf32> to vector<2x64xf32>
    %150 = vector.extract_strided_slice %147 {offsets = [0, 128], sizes = [2, 64], strides = [1, 1]} : vector<2x256xf32> to vector<2x64xf32>
    %151 = vector.extract_strided_slice %146 {offsets = [0, 192], sizes = [2, 64], strides = [1, 1]} : vector<2x256xf32> to vector<2x64xf32>
    %152 = arith.mulf %149, %136 : vector<2x64xf32>
    %153 = arith.mulf %148, %150 : vector<2x64xf32>
    %154 = arith.addf %152, %153 : vector<2x64xf32>
    %155 = math.tanh %154 : vector<2x64xf32>
    %156 = arith.mulf %151, %155 : vector<2x64xf32>
    %157 = vector.extract_strided_slice %30 {offsets = [0, 0], sizes = [2, 32], strides = [1, 1]} : vector<2x64xf32> to vector<2x32xf32>
    %158 = vector.extract_strided_slice %156 {offsets = [0, 32], sizes = [2, 32], strides = [1, 1]} : vector<2x64xf32> to vector<2x32xf32>
    %159 = tpu.concatenate %157, %158 in 1 : vector<2x32xf32>, vector<2x32xf32> -> vector<2x64xf32>
    %160 = vector.extract_strided_slice %48 {offsets = [0, 0], sizes = [2, 32], strides = [1, 1]} : vector<2x64xf32> to vector<2x32xf32>
    %161 = vector.extract_strided_slice %138 {offsets = [0, 32], sizes = [2, 32], strides = [1, 1]} : vector<2x64xf32> to vector<2x32xf32>
    %162 = tpu.concatenate %160, %161 in 1 : vector<2x32xf32>, vector<2x32xf32> -> vector<2x64xf32>
    %163 = vector.extract_strided_slice %66 {offsets = [0, 0], sizes = [2, 32], strides = [1, 1]} : vector<2x64xf32> to vector<2x32xf32>
    %164 = vector.extract_strided_slice %120 {offsets = [0, 32], sizes = [2, 32], strides = [1, 1]} : vector<2x64xf32> to vector<2x32xf32>
    %165 = tpu.concatenate %163, %164 in 1 : vector<2x32xf32>, vector<2x32xf32> -> vector<2x64xf32>
    %166 = vector.extract_strided_slice %84 {offsets = [0, 0], sizes = [2, 32], strides = [1, 1]} : vector<2x64xf32> to vector<2x32xf32>
    %167 = vector.extract_strided_slice %102 {offsets = [0, 32], sizes = [2, 32], strides = [1, 1]} : vector<2x64xf32> to vector<2x32xf32>
    %168 = tpu.concatenate %166, %167 in 1 : vector<2x32xf32>, vector<2x32xf32> -> vector<2x64xf32>
    %169 = vector.extract_strided_slice %102 {offsets = [0, 0], sizes = [2, 32], strides = [1, 1]} : vector<2x64xf32> to vector<2x32xf32>
    %170 = vector.extract_strided_slice %84 {offsets = [0, 32], sizes = [2, 32], strides = [1, 1]} : vector<2x64xf32> to vector<2x32xf32>
    %171 = tpu.concatenate %169, %170 in 1 : vector<2x32xf32>, vector<2x32xf32> -> vector<2x64xf32>
    %172 = vector.extract_strided_slice %120 {offsets = [0, 0], sizes = [2, 32], strides = [1, 1]} : vector<2x64xf32> to vector<2x32xf32>
    %173 = vector.extract_strided_slice %66 {offsets = [0, 32], sizes = [2, 32], strides = [1, 1]} : vector<2x64xf32> to vector<2x32xf32>
    %174 = tpu.concatenate %172, %173 in 1 : vector<2x32xf32>, vector<2x32xf32> -> vector<2x64xf32>
    %175 = vector.extract_strided_slice %138 {offsets = [0, 0], sizes = [2, 32], strides = [1, 1]} : vector<2x64xf32> to vector<2x32xf32>
    %176 = vector.extract_strided_slice %48 {offsets = [0, 32], sizes = [2, 32], strides = [1, 1]} : vector<2x64xf32> to vector<2x32xf32>
    %177 = tpu.concatenate %175, %176 in 1 : vector<2x32xf32>, vector<2x32xf32> -> vector<2x64xf32>
    %178 = vector.extract_strided_slice %156 {offsets = [0, 0], sizes = [2, 32], strides = [1, 1]} : vector<2x64xf32> to vector<2x32xf32>
    %179 = vector.extract_strided_slice %30 {offsets = [0, 32], sizes = [2, 32], strides = [1, 1]} : vector<2x64xf32> to vector<2x32xf32>
    %180 = tpu.concatenate %178, %179 in 1 : vector<2x32xf32>, vector<2x32xf32> -> vector<2x64xf32>
    %181 = arith.maximumf %159, %162 : vector<2x64xf32>
    %182 = arith.maximumf %165, %168 : vector<2x64xf32>
    %183 = arith.maximumf %171, %174 : vector<2x64xf32>
    %184 = arith.maximumf %177, %180 : vector<2x64xf32>
    %c0_i32_23 = arith.constant 0 : i32
    %185 = tpu.memref_slice %arg9[%c0_i32_23] : memref<2x!tpu.dma_semaphore, #tpu.memory_space<semaphore_mem>> -> memref<1x!tpu.dma_semaphore, #tpu.memory_space<semaphore_mem>>
    %186 = tpu.memref_squeeze %185 : memref<1x!tpu.dma_semaphore, #tpu.memory_space<semaphore_mem>> -> memref<!tpu.dma_semaphore, #tpu.memory_space<semaphore_mem>>
    tpu.wait_dma2 semaphore(%186 : memref<!tpu.dma_semaphore, #tpu.memory_space<semaphore_mem>>) src(%arg2 : memref<200x256xf32, #tpu.memory_space<any>>) dst(%arg7 : memref<200x256xf32, #tpu.memory_space<vmem>>)
    %187 = tpu.concatenate %181, %184 in 1 : vector<2x64xf32>, vector<2x64xf32> -> vector<2x128xf32>
    %188 = tpu.concatenate %182, %183 in 1 : vector<2x64xf32>, vector<2x64xf32> -> vector<2x128xf32>
    %189 = tpu.concatenate %183, %182 in 1 : vector<2x64xf32>, vector<2x64xf32> -> vector<2x128xf32>
    %190 = tpu.concatenate %184, %181 in 1 : vector<2x64xf32>, vector<2x64xf32> -> vector<2x128xf32>
    %191 = tpu.concatenate %187, %188, %189, %190 in 0 : vector<2x128xf32>, vector<2x128xf32>, vector<2x128xf32>, vector<2x128xf32> -> vector<8x128xf32>
    %c0_24 = arith.constant 0 : index
    %c0_25 = arith.constant 0 : index
    %192 = vector.load %arg7[%c0_24, %c0_25] : memref<200x256xf32, #tpu.memory_space<vmem>>, vector<128x256xf32>
    %c128 = arith.constant 128 : index
    %c0_26 = arith.constant 0 : index
    %193 = vector.load %arg7[%c128, %c0_26] : memref<200x256xf32, #tpu.memory_space<vmem>>, vector<64x256xf32>
    %c192 = arith.constant 192 : index
    %c0_27 = arith.constant 0 : index
    %194 = vector.load %arg7[%c192, %c0_27] : memref<200x256xf32, #tpu.memory_space<vmem>>, vector<1x256xf32>
    %cst_28 = arith.constant dense<0.000000e+00> : vector<8x256xf32>
    %195 = tpu.matmul %191, %192, %cst_28 {dimension_numbers = #tpu.dot_dimension_numbers<[1], [0], [0], [1], [0, 0, 1, 1], [], []>} : vector<8x128xf32>, vector<128x256xf32>, vector<8x256xf32> -> vector<8x256xf32>
    %196 = vector.broadcast %194 : vector<1x256xf32> to vector<8x256xf32>
    %197 = arith.addf %195, %196 : vector<8x256xf32>
    %cst_29 = arith.constant 0.000000e+00 : f32
    %198 = vector.broadcast %cst_29 : f32 to vector<2x64xf32>
    %cst_30 = arith.constant 0.000000e+00 : f32
    %199 = vector.broadcast %cst_30 : f32 to vector<2x64xf32>
    %200 = vector.extract_strided_slice %197 {offsets = [0, 0], sizes = [2, 256], strides = [1, 1]} : vector<8x256xf32> to vector<2x256xf32>
    %cst_31 = arith.constant dense<0.000000e+00> : vector<2x256xf32>
    %201 = tpu.matmul %198, %193, %cst_31 {dimension_numbers = #tpu.dot_dimension_numbers<[1], [0], [0], [1], [0, 0, 1, 1], [], []>} : vector<2x64xf32>, vector<64x256xf32>, vector<2x256xf32> -> vector<2x256xf32>
    %202 = arith.addf %200, %201 : vector<2x256xf32>
    %203 = arith.negf %202 : vector<2x256xf32>
    %204 = math.exp %203 : vector<2x256xf32>
    %cst_32 = arith.constant 1.000000e+00 : f32
    %205 = vector.broadcast %cst_32 : f32 to vector<2x256xf32>
    %206 = arith.addf %205, %204 : vector<2x256xf32>
    %207 = arith.divf %205, %206 : vector<2x256xf32>
    %208 = math.tanh %202 : vector<2x256xf32>
    %209 = vector.extract_strided_slice %207 {offsets = [0, 0], sizes = [2, 64], strides = [1, 1]} : vector<2x256xf32> to vector<2x64xf32>
    %210 = vector.extract_strided_slice %207 {offsets = [0, 64], sizes = [2, 64], strides = [1, 1]} : vector<2x256xf32> to vector<2x64xf32>
    %211 = vector.extract_strided_slice %208 {offsets = [0, 128], sizes = [2, 64], strides = [1, 1]} : vector<2x256xf32> to vector<2x64xf32>
    %212 = vector.extract_strided_slice %207 {offsets = [0, 192], sizes = [2, 64], strides = [1, 1]} : vector<2x256xf32> to vector<2x64xf32>
    %213 = arith.mulf %210, %199 : vector<2x64xf32>
    %214 = arith.mulf %209, %211 : vector<2x64xf32>
    %215 = arith.addf %213, %214 : vector<2x64xf32>
    %216 = math.tanh %215 : vector<2x64xf32>
    %217 = arith.mulf %212, %216 : vector<2x64xf32>
    %218 = vector.extract_strided_slice %197 {offsets = [2, 0], sizes = [2, 256], strides = [1, 1]} : vector<8x256xf32> to vector<2x256xf32>
    %cst_33 = arith.constant dense<0.000000e+00> : vector<2x256xf32>
    %219 = tpu.matmul %217, %193, %cst_33 {dimension_numbers = #tpu.dot_dimension_numbers<[1], [0], [0], [1], [0, 0, 1, 1], [], []>} : vector<2x64xf32>, vector<64x256xf32>, vector<2x256xf32> -> vector<2x256xf32>
    %220 = arith.addf %218, %219 : vector<2x256xf32>
    %221 = arith.negf %220 : vector<2x256xf32>
    %222 = math.exp %221 : vector<2x256xf32>
    %cst_34 = arith.constant 1.000000e+00 : f32
    %223 = vector.broadcast %cst_34 : f32 to vector<2x256xf32>
    %224 = arith.addf %223, %222 : vector<2x256xf32>
    %225 = arith.divf %223, %224 : vector<2x256xf32>
    %226 = math.tanh %220 : vector<2x256xf32>
    %227 = vector.extract_strided_slice %225 {offsets = [0, 0], sizes = [2, 64], strides = [1, 1]} : vector<2x256xf32> to vector<2x64xf32>
    %228 = vector.extract_strided_slice %225 {offsets = [0, 64], sizes = [2, 64], strides = [1, 1]} : vector<2x256xf32> to vector<2x64xf32>
    %229 = vector.extract_strided_slice %226 {offsets = [0, 128], sizes = [2, 64], strides = [1, 1]} : vector<2x256xf32> to vector<2x64xf32>
    %230 = vector.extract_strided_slice %225 {offsets = [0, 192], sizes = [2, 64], strides = [1, 1]} : vector<2x256xf32> to vector<2x64xf32>
    %231 = arith.mulf %228, %215 : vector<2x64xf32>
    %232 = arith.mulf %227, %229 : vector<2x64xf32>
    %233 = arith.addf %231, %232 : vector<2x64xf32>
    %234 = math.tanh %233 : vector<2x64xf32>
    %235 = arith.mulf %230, %234 : vector<2x64xf32>
    %236 = vector.extract_strided_slice %197 {offsets = [4, 0], sizes = [2, 256], strides = [1, 1]} : vector<8x256xf32> to vector<2x256xf32>
    %cst_35 = arith.constant dense<0.000000e+00> : vector<2x256xf32>
    %237 = tpu.matmul %235, %193, %cst_35 {dimension_numbers = #tpu.dot_dimension_numbers<[1], [0], [0], [1], [0, 0, 1, 1], [], []>} : vector<2x64xf32>, vector<64x256xf32>, vector<2x256xf32> -> vector<2x256xf32>
    %238 = arith.addf %236, %237 : vector<2x256xf32>
    %239 = arith.negf %238 : vector<2x256xf32>
    %240 = math.exp %239 : vector<2x256xf32>
    %cst_36 = arith.constant 1.000000e+00 : f32
    %241 = vector.broadcast %cst_36 : f32 to vector<2x256xf32>
    %242 = arith.addf %241, %240 : vector<2x256xf32>
    %243 = arith.divf %241, %242 : vector<2x256xf32>
    %244 = math.tanh %238 : vector<2x256xf32>
    %245 = vector.extract_strided_slice %243 {offsets = [0, 0], sizes = [2, 64], strides = [1, 1]} : vector<2x256xf32> to vector<2x64xf32>
    %246 = vector.extract_strided_slice %243 {offsets = [0, 64], sizes = [2, 64], strides = [1, 1]} : vector<2x256xf32> to vector<2x64xf32>
    %247 = vector.extract_strided_slice %244 {offsets = [0, 128], sizes = [2, 64], strides = [1, 1]} : vector<2x256xf32> to vector<2x64xf32>
    %248 = vector.extract_strided_slice %243 {offsets = [0, 192], sizes = [2, 64], strides = [1, 1]} : vector<2x256xf32> to vector<2x64xf32>
    %249 = arith.mulf %246, %233 : vector<2x64xf32>
    %250 = arith.mulf %245, %247 : vector<2x64xf32>
    %251 = arith.addf %249, %250 : vector<2x64xf32>
    %252 = math.tanh %251 : vector<2x64xf32>
    %253 = arith.mulf %248, %252 : vector<2x64xf32>
    %254 = vector.extract_strided_slice %197 {offsets = [6, 0], sizes = [2, 256], strides = [1, 1]} : vector<8x256xf32> to vector<2x256xf32>
    %cst_37 = arith.constant dense<0.000000e+00> : vector<2x256xf32>
    %255 = tpu.matmul %253, %193, %cst_37 {dimension_numbers = #tpu.dot_dimension_numbers<[1], [0], [0], [1], [0, 0, 1, 1], [], []>} : vector<2x64xf32>, vector<64x256xf32>, vector<2x256xf32> -> vector<2x256xf32>
    %256 = arith.addf %254, %255 : vector<2x256xf32>
    %257 = arith.negf %256 : vector<2x256xf32>
    %258 = math.exp %257 : vector<2x256xf32>
    %cst_38 = arith.constant 1.000000e+00 : f32
    %259 = vector.broadcast %cst_38 : f32 to vector<2x256xf32>
    %260 = arith.addf %259, %258 : vector<2x256xf32>
    %261 = arith.divf %259, %260 : vector<2x256xf32>
    %262 = math.tanh %256 : vector<2x256xf32>
    %263 = vector.extract_strided_slice %261 {offsets = [0, 0], sizes = [2, 64], strides = [1, 1]} : vector<2x256xf32> to vector<2x64xf32>
    %264 = vector.extract_strided_slice %261 {offsets = [0, 64], sizes = [2, 64], strides = [1, 1]} : vector<2x256xf32> to vector<2x64xf32>
    %265 = vector.extract_strided_slice %262 {offsets = [0, 128], sizes = [2, 64], strides = [1, 1]} : vector<2x256xf32> to vector<2x64xf32>
    %266 = vector.extract_strided_slice %261 {offsets = [0, 192], sizes = [2, 64], strides = [1, 1]} : vector<2x256xf32> to vector<2x64xf32>
    %267 = arith.mulf %264, %251 : vector<2x64xf32>
    %268 = arith.mulf %263, %265 : vector<2x64xf32>
    %269 = arith.addf %267, %268 : vector<2x64xf32>
    %270 = math.tanh %269 : vector<2x64xf32>
    %271 = arith.mulf %266, %270 : vector<2x64xf32>
    %272 = vector.extract_strided_slice %217 {offsets = [0, 0], sizes = [2, 32], strides = [1, 1]} : vector<2x64xf32> to vector<2x32xf32>
    %273 = vector.extract_strided_slice %271 {offsets = [0, 32], sizes = [2, 32], strides = [1, 1]} : vector<2x64xf32> to vector<2x32xf32>
    %274 = tpu.concatenate %272, %273 in 1 : vector<2x32xf32>, vector<2x32xf32> -> vector<2x64xf32>
    %275 = vector.extract_strided_slice %235 {offsets = [0, 0], sizes = [2, 32], strides = [1, 1]} : vector<2x64xf32> to vector<2x32xf32>
    %276 = vector.extract_strided_slice %253 {offsets = [0, 32], sizes = [2, 32], strides = [1, 1]} : vector<2x64xf32> to vector<2x32xf32>
    %277 = tpu.concatenate %275, %276 in 1 : vector<2x32xf32>, vector<2x32xf32> -> vector<2x64xf32>
    %278 = vector.extract_strided_slice %253 {offsets = [0, 0], sizes = [2, 32], strides = [1, 1]} : vector<2x64xf32> to vector<2x32xf32>
    %279 = vector.extract_strided_slice %235 {offsets = [0, 32], sizes = [2, 32], strides = [1, 1]} : vector<2x64xf32> to vector<2x32xf32>
    %280 = tpu.concatenate %278, %279 in 1 : vector<2x32xf32>, vector<2x32xf32> -> vector<2x64xf32>
    %281 = vector.extract_strided_slice %271 {offsets = [0, 0], sizes = [2, 32], strides = [1, 1]} : vector<2x64xf32> to vector<2x32xf32>
    %282 = vector.extract_strided_slice %217 {offsets = [0, 32], sizes = [2, 32], strides = [1, 1]} : vector<2x64xf32> to vector<2x32xf32>
    %283 = tpu.concatenate %281, %282 in 1 : vector<2x32xf32>, vector<2x32xf32> -> vector<2x64xf32>
    %284 = arith.maximumf %274, %277 : vector<2x64xf32>
    %285 = arith.maximumf %280, %283 : vector<2x64xf32>
    %c1_i32_39 = arith.constant 1 : i32
    %286 = tpu.memref_slice %arg9[%c1_i32_39] : memref<2x!tpu.dma_semaphore, #tpu.memory_space<semaphore_mem>> -> memref<1x!tpu.dma_semaphore, #tpu.memory_space<semaphore_mem>>
    %287 = tpu.memref_squeeze %286 : memref<1x!tpu.dma_semaphore, #tpu.memory_space<semaphore_mem>> -> memref<!tpu.dma_semaphore, #tpu.memory_space<semaphore_mem>>
    tpu.wait_dma2 semaphore(%287 : memref<!tpu.dma_semaphore, #tpu.memory_space<semaphore_mem>>) src(%arg3 : memref<200x256xf32, #tpu.memory_space<any>>) dst(%arg8 : memref<200x256xf32, #tpu.memory_space<vmem>>)
    %288 = tpu.concatenate %284, %285 in 1 : vector<2x64xf32>, vector<2x64xf32> -> vector<2x128xf32>
    %289 = tpu.concatenate %285, %284 in 1 : vector<2x64xf32>, vector<2x64xf32> -> vector<2x128xf32>
    %290 = tpu.concatenate %288, %289 in 0 : vector<2x128xf32>, vector<2x128xf32> -> vector<4x128xf32>
    %c0_40 = arith.constant 0 : index
    %c0_41 = arith.constant 0 : index
    %291 = vector.load %arg8[%c0_40, %c0_41] : memref<200x256xf32, #tpu.memory_space<vmem>>, vector<128x256xf32>
    %c128_42 = arith.constant 128 : index
    %c0_43 = arith.constant 0 : index
    %292 = vector.load %arg8[%c128_42, %c0_43] : memref<200x256xf32, #tpu.memory_space<vmem>>, vector<64x256xf32>
    %c192_44 = arith.constant 192 : index
    %c0_45 = arith.constant 0 : index
    %293 = vector.load %arg8[%c192_44, %c0_45] : memref<200x256xf32, #tpu.memory_space<vmem>>, vector<1x256xf32>
    %cst_46 = arith.constant dense<0.000000e+00> : vector<4x256xf32>
    %294 = tpu.matmul %290, %291, %cst_46 {dimension_numbers = #tpu.dot_dimension_numbers<[1], [0], [0], [1], [0, 0, 1, 1], [], []>} : vector<4x128xf32>, vector<128x256xf32>, vector<4x256xf32> -> vector<4x256xf32>
    %295 = vector.broadcast %293 : vector<1x256xf32> to vector<4x256xf32>
    %296 = arith.addf %294, %295 : vector<4x256xf32>
    %cst_47 = arith.constant 0.000000e+00 : f32
    %297 = vector.broadcast %cst_47 : f32 to vector<2x64xf32>
    %cst_48 = arith.constant 0.000000e+00 : f32
    %298 = vector.broadcast %cst_48 : f32 to vector<2x64xf32>
    %299 = vector.extract_strided_slice %296 {offsets = [0, 0], sizes = [2, 256], strides = [1, 1]} : vector<4x256xf32> to vector<2x256xf32>
    %cst_49 = arith.constant dense<0.000000e+00> : vector<2x256xf32>
    %300 = tpu.matmul %297, %292, %cst_49 {dimension_numbers = #tpu.dot_dimension_numbers<[1], [0], [0], [1], [0, 0, 1, 1], [], []>} : vector<2x64xf32>, vector<64x256xf32>, vector<2x256xf32> -> vector<2x256xf32>
    %301 = arith.addf %299, %300 : vector<2x256xf32>
    %302 = arith.negf %301 : vector<2x256xf32>
    %303 = math.exp %302 : vector<2x256xf32>
    %cst_50 = arith.constant 1.000000e+00 : f32
    %304 = vector.broadcast %cst_50 : f32 to vector<2x256xf32>
    %305 = arith.addf %304, %303 : vector<2x256xf32>
    %306 = arith.divf %304, %305 : vector<2x256xf32>
    %307 = math.tanh %301 : vector<2x256xf32>
    %308 = vector.extract_strided_slice %306 {offsets = [0, 0], sizes = [2, 64], strides = [1, 1]} : vector<2x256xf32> to vector<2x64xf32>
    %309 = vector.extract_strided_slice %306 {offsets = [0, 64], sizes = [2, 64], strides = [1, 1]} : vector<2x256xf32> to vector<2x64xf32>
    %310 = vector.extract_strided_slice %307 {offsets = [0, 128], sizes = [2, 64], strides = [1, 1]} : vector<2x256xf32> to vector<2x64xf32>
    %311 = vector.extract_strided_slice %306 {offsets = [0, 192], sizes = [2, 64], strides = [1, 1]} : vector<2x256xf32> to vector<2x64xf32>
    %312 = arith.mulf %309, %298 : vector<2x64xf32>
    %313 = arith.mulf %308, %310 : vector<2x64xf32>
    %314 = arith.addf %312, %313 : vector<2x64xf32>
    %315 = math.tanh %314 : vector<2x64xf32>
    %316 = arith.mulf %311, %315 : vector<2x64xf32>
    %317 = vector.extract_strided_slice %296 {offsets = [2, 0], sizes = [2, 256], strides = [1, 1]} : vector<4x256xf32> to vector<2x256xf32>
    %cst_51 = arith.constant dense<0.000000e+00> : vector<2x256xf32>
    %318 = tpu.matmul %316, %292, %cst_51 {dimension_numbers = #tpu.dot_dimension_numbers<[1], [0], [0], [1], [0, 0, 1, 1], [], []>} : vector<2x64xf32>, vector<64x256xf32>, vector<2x256xf32> -> vector<2x256xf32>
    %319 = arith.addf %317, %318 : vector<2x256xf32>
    %320 = arith.negf %319 : vector<2x256xf32>
    %321 = math.exp %320 : vector<2x256xf32>
    %cst_52 = arith.constant 1.000000e+00 : f32
    %322 = vector.broadcast %cst_52 : f32 to vector<2x256xf32>
    %323 = arith.addf %322, %321 : vector<2x256xf32>
    %324 = arith.divf %322, %323 : vector<2x256xf32>
    %325 = math.tanh %319 : vector<2x256xf32>
    %326 = vector.extract_strided_slice %324 {offsets = [0, 0], sizes = [2, 64], strides = [1, 1]} : vector<2x256xf32> to vector<2x64xf32>
    %327 = vector.extract_strided_slice %324 {offsets = [0, 64], sizes = [2, 64], strides = [1, 1]} : vector<2x256xf32> to vector<2x64xf32>
    %328 = vector.extract_strided_slice %325 {offsets = [0, 128], sizes = [2, 64], strides = [1, 1]} : vector<2x256xf32> to vector<2x64xf32>
    %329 = vector.extract_strided_slice %324 {offsets = [0, 192], sizes = [2, 64], strides = [1, 1]} : vector<2x256xf32> to vector<2x64xf32>
    %330 = arith.mulf %327, %314 : vector<2x64xf32>
    %331 = arith.mulf %326, %328 : vector<2x64xf32>
    %332 = arith.addf %330, %331 : vector<2x64xf32>
    %333 = math.tanh %332 : vector<2x64xf32>
    %334 = arith.mulf %329, %333 : vector<2x64xf32>
    %335 = vector.extract_strided_slice %334 {offsets = [0, 0], sizes = [2, 32], strides = [1, 1]} : vector<2x64xf32> to vector<2x32xf32>
    %336 = vector.extract_strided_slice %316 {offsets = [0, 32], sizes = [2, 32], strides = [1, 1]} : vector<2x64xf32> to vector<2x32xf32>
    %337 = tpu.concatenate %335, %336 in 1 : vector<2x32xf32>, vector<2x32xf32> -> vector<2x64xf32>
    %c0_53 = arith.constant 0 : index
    %c0_54 = arith.constant 0 : index
    %338 = vector.load %arg4[%c0_53, %c0_54] : memref<64x2xf32, #tpu.memory_space<vmem>>, vector<64x2xf32>
    %cst_55 = arith.constant dense<0.000000e+00> : vector<2x2xf32>
    %339 = tpu.matmul %337, %338, %cst_55 {dimension_numbers = #tpu.dot_dimension_numbers<[1], [0], [0], [1], [0, 0, 1, 1], [], []>} : vector<2x64xf32>, vector<64x2xf32>, vector<2x2xf32> -> vector<2x2xf32>
    %c0_56 = arith.constant 0 : index
    %c0_57 = arith.constant 0 : index
    %340 = vector.load %arg5[%c0_56, %c0_57] : memref<1x2xf32, #tpu.memory_space<vmem>>, vector<1x2xf32>
    %341 = vector.broadcast %340 : vector<1x2xf32> to vector<2x2xf32>
    %342 = arith.addf %339, %341 : vector<2x2xf32>
    %c0_58 = arith.constant 0 : index
    %c0_59 = arith.constant 0 : index
    %343 = vector.load %arg6[%c0_58, %c0_59] : memref<2x2xf32, #tpu.memory_space<vmem>>, vector<2x2xf32>
    tpu.vector_store %arg6[%c0_58, %c0_59], %342 {strides = array<i32>} : memref<2x2xf32, #tpu.memory_space<vmem>>, vector<2x2xf32>,
    return
  }
}

</mosaic_0001>

<llo_original>
// kernel: model_1_forward.1
$region0: #{model_1_forward.1}
  #allocation0 [shape = 'u32[]', space=smem, size = 0x4, offset = 0x4, fixed_abs, tag = 'smem constant byte address 0x4 - core index']
  #allocation1 [shape = 'u32[144,128]{1,0:T(1,128)}', space=vmem, size = 0x12000, scoped, tag = 'internal scratch']
  #allocation2 [shape = 'f32[200,256]{1,0:T(8,128)}', space=vmem, size = 0x32000, scoped, tag = 'scratch operand']
  #allocation3 [shape = 'f32[200,256]{1,0:T(8,128)}', space=vmem, size = 0x32000, scoped, tag = 'scratch operand']
  #allocation4 [shape = 's32[2]{0}', space=sflag, size = 0x8, scoped, tag = 'scratch operand']
  #allocation9 [shape = 's32[]', space=sflag, size = 0x4, offset = 0, fixed_abs, tag = 'sflag constant byte address 0x0 - dummy sync flag']
  #allocation10 [shape = 's32[]', space=sflag, size = 0x4, offset = 0, fixed_abs, tag = 'sflag constant byte address 0x0 - dummy sync flag']
  #allocation11 [shape = 'u32[]', space=smem, size = 0x4, offset = 0x44, fixed_abs, tag = 'smem constant byte address 0x44 - assertion arg 0']
  #allocation12 [shape = 'u32[]', space=smem, size = 0x4, offset = 0x48, fixed_abs, tag = 'smem constant byte address 0x48 - assertion arg 1']
  #allocation13 [shape = 's32[]', space=sflag, size = 0x4, offset = 0, fixed_abs, tag = 'sflag constant byte address 0x0 - dummy sync flag']
  #allocation14 [shape = 's32[]', space=sflag, size = 0x4, offset = 0, fixed_abs, tag = 'sflag constant byte address 0x0 - dummy sync flag']
  %s0 = inlined_call_operand.vmem [shape: f32[16,32], index: 0, kind: input, shape index: {}]
  %s1 = inlined_call_operand.hbm [shape: f32[104,256], index: 1, kind: input, shape index: {}]
  %s2 = inlined_call_operand.hbm [shape: f32[200,256], index: 2, kind: input, shape index: {}]
  %s3 = inlined_call_operand.hbm [shape: f32[200,256], index: 3, kind: input, shape index: {}]
  %s4 = inlined_call_operand.vmem [shape: f32[64,2], index: 4, kind: input, shape index: {}]
  %s5 = inlined_call_operand.vmem [shape: f32[1,2], index: 5, kind: input, shape index: {}]
  %s6 = inlined_call_operand.hbm [shape: f32[2,2], index: 6, kind: output, shape index: {}]
  %s7 = sld [smem:[#allocation0]]
  $region38: #{model_1_forward.1} parent=0
    _
  %s9 = ssub.s32 1, %s7
  %s10 = scalar_select 0, %s9, %s7
  $region1: #{model_1_forward.1} parent=0
    #allocation5 [shape = 'u8[106496]{0}', space=vmem, size = 0x1a000, scoped, tag = 'input window, operand 1, single buffered']
    #allocation6 [shape = 's32[1]{0}', space=sflag, size = 0x4, scoped, tag = 'scoped memory for model_1_forward.1']
    #allocation7 [shape = 's32[1]{0}', space=sflag, size = 0x4, scoped, tag = 'scoped memory for model_1_forward.1']
    #allocation8 [shape = 'u8[1024]{0}', space=vmem, size = 0x400, scoped, tag = 'output window, operand 0, single buffered']
    %11 = vsyncpa [#allocation6], 0
    %12 = vsyncpa [#allocation7], 0
    // Predicated region
    $region2: #{model_1_forward.1} parent=1 // pred_check
      _
    $region3: #{model_1_forward.1} parent=1 // pred_check_branch
      %14 = sbr.rel (0) target = $region5
    $region4: #{model_1_forward.1} parent=1 // pred_region
      _
    $region5: #{model_1_forward.1} parent=1 // pred_fallthru
      _
    // Predicated region
    $region6: #{model_1_forward.1} parent=1 // pred_check
      _
    $region7: #{model_1_forward.1} parent=1 // pred_check_branch
      %16 = sbr.rel (0) target = $region9
    $region8: #{model_1_forward.1} parent=1 // pred_region
      %s18 = ssub.s32 3328, 3328
      %19 = vsyncadd [#allocation6], %s18
      %s20 = sshll.u32 [#allocation5], 4
      %s21 = int_to_ptr.vmem [resolvable:$true] %s20
      %26 = dma.hbm_to_vmem [thread:$0]  %s1, 3328, %s21, [#allocation6], 256, 256, 16
    $region9: #{model_1_forward.1} parent=1 // pred_fallthru
      _
    // Predicated region
    $region10: #{model_1_forward.1} parent=1 // pred_check
      _
    $region11: #{model_1_forward.1} parent=1 // pred_check_branch
      %28 = sbr.rel (0) target = $region13
    $region12: #{model_1_forward.1} parent=1 // pred_region
      _
    $region13: #{model_1_forward.1} parent=1 // pred_fallthru
      _
    // Predicated region
    $region14: #{model_1_forward.1} parent=1 // pred_check
      _
    $region15: #{model_1_forward.1} parent=1 // pred_check_branch
      %30 = sbr.rel (0) target = $region17
    $region16: #{model_1_forward.1} parent=1 // pred_region
      _
    $region17: #{model_1_forward.1} parent=1 // pred_fallthru
      _
    // Predicated region
    $region18: #{model_1_forward.1} parent=1 // pred_check
      _
    $region19: #{model_1_forward.1} parent=1 // pred_check_branch
      %32 = sbr.rel (0) target = $region21
    $region20: #{model_1_forward.1} parent=1 // pred_region
      %33 = dma.done [#allocation6], 3328
    $region21: #{model_1_forward.1} parent=1 // pred_fallthru
      _
    // Predicated region
    $region22: #{model_1_forward.1} parent=1 // pred_check
      _
    $region23: #{model_1_forward.1} parent=1 // pred_check_branch
      %35 = sbr.rel target = $region25
    $region24: #{model_1_forward.1} parent=1 // pred_region
      %36 = sst [smem:[#allocation11]] [#allocation10]
      %37 = sst [smem:[#allocation12]] [#allocation9]
    $region25: #{model_1_forward.1} parent=1 // pred_fallthru
      _
    %39 = shalt.err (0)
    %s41 = sshll.u32 [#allocation2], 4
    %s42 = int_to_ptr.vmem [resolvable:$true] %s41
    %44 = dma.hbm_to_vmem [thread:$0]  %s2, 6400, %s42, [#allocation4]
    %s45 = scalar_lea.sflag [#allocation4], 1
    // Predicated region
    $region26: #{model_1_forward.1} parent=1 // pred_check
      _
    $region27: #{model_1_forward.1} parent=1 // pred_check_branch
      %47 = sbr.rel target = $region29
    $region28: #{model_1_forward.1} parent=1 // pred_region
      %48 = sst [smem:[#allocation11]] [#allocation14]
      %49 = sst [smem:[#allocation12]] [#allocation13]
    $region29: #{model_1_forward.1} parent=1 // pred_fallthru
      _
    %51 = shalt.err (0)
    %s53 = sshll.u32 [#allocation3], 4
    %s54 = int_to_ptr.vmem [resolvable:$true] %s53
    %56 = dma.hbm_to_vmem [thread:$0]  %s3, 6400, %s54, %s45
    %v57 = vld [vmem:[%s0] sm:$0xff]
    %v58 = vld [vmem:[%s0 + $0x8] sm:$0xff]
    %v59 = vld [vmem:[#allocation5] sm:$0xff]
    %v60 = vld [vmem:[#allocation5 + $0x8] sm:$0xff]
    %v61 = vld [vmem:[#allocation5 + $0x10] sm:$0xff]
    %v62 = vld [vmem:[#allocation5 + $0x18] sm:$0xff]
    %v63 = vld [vmem:[#allocation5 + $0x20] sm:$0xff]
    %v64 = vld [vmem:[#allocation5 + $0x28] sm:$0xff]
    %v65 = vld [vmem:[#allocation5 + $0x30] sm:$0xff]
    %v66 = vld [vmem:[#allocation5 + $0x38] sm:$0xff]
    %v67 = vld [vmem:[#allocation5 + $0x40] sm:$0xff]
    %v68 = vld [vmem:[#allocation5 + $0x48] sm:$0xff]
    %v69 = vld [vmem:[#allocation5 + $0x50] sm:$0xff]
    %v70 = vld [vmem:[#allocation5 + $0x58] sm:$0xff]
    %v71 = vld [vmem:[#allocation5 + $0x60] sm:$0xff]
    %v72 = vld [vmem:[#allocation5 + $0x68] sm:$0xff]
    %v73 = vld [vmem:[#allocation5 + $0x70] sm:$0xff]
    %v74 = vld [vmem:[#allocation5 + $0x78] sm:$0xff]
    %v75 = vld [vmem:[#allocation5 + $0x80] sm:$0xff]
    %v76 = vld [vmem:[#allocation5 + $0x88] sm:$0xff]
    %v77 = vld [vmem:[#allocation5 + $0x90] sm:$0xff]
    %v78 = vld [vmem:[#allocation5 + $0x98] sm:$0xff]
    %v79 = vld [vmem:[#allocation5 + $0xa0] sm:$0xff]
    %v80 = vld [vmem:[#allocation5 + $0xa8] sm:$0xff]
    %v81 = vld [vmem:[#allocation5 + $0xb0] sm:$0xff]
    %v82 = vld [vmem:[#allocation5 + $0xb8] sm:$0xff]
    %s83 = scalar_lea.vmem [#allocation5], 192
    %v84 = vld [vmem:[%s83] ss:$8 sm:$0x3]
    %v86 = vlaneseq
    %v87 = vshrl.u32 %v86, 7
    %v88 = vsub.s32 0, %v87
    %v89 = vrot.slane %v84, %v88
    %v90 = vlaneseq
    %v91 = vshrl.u32 %v90, 7
    %v92 = vsub.s32 1, %v91
    %v93 = vrot.slane %v84, %v92
    %vm96 = vcmask 261120
    %v98 = vsel %vm96, %v57, 0
    %v101 = vsel %vm96, %v58, 0
    %103 = vmatprep.subr.mxu0 %v60
    %104 = vmatpush1.msra.mxu0 %v59
    %105 = vmatprep.subr.mxu0 %v62
    %106 = vmatpush1.msra.mxu0 %v61
    %107 = vmatprep.subr.mxu0 %v64
    %108 = vmatpush1.msra.mxu0 %v63
    %109 = vmatprep.subr.mxu0 %v66
    %110 = vmatpush1.msra.mxu0 %v65
    %111 = vmatprep.subr.mxu0 0.0
    %112 = vmatpush1.msra.mxu0 0.0
    %113 = vmatprep.subr.mxu0 0.0
    %114 = vmatpush1.msra.mxu0 0.0
    %115 = vmatprep.subr.mxu0 0.0
    %116 = vmatpush1.msra.mxu0 0.0
    %117 = vmatprep.subr.mxu0 0.0
    %118 = vmatpush1.msra.mxu0 0.0
    %119 = vmatprep.subr.mxu0 0.0
    %120 = vmatpush1.msra.mxu0 0.0
    %121 = vmatprep.subr.mxu0 0.0
    %122 = vmatpush1.msra.mxu0 0.0
    %123 = vmatprep.subr.mxu0 0.0
    %124 = vmatpush1.msra.mxu0 0.0
    %125 = vmatprep.subr.mxu0 0.0
    %126 = vmatpush1.msra.mxu0 0.0
    %127 = vmatprep.subr.mxu0 0.0
    %128 = vmatpush1.msra.mxu0 0.0
    %129 = vmatprep.subr.mxu0 0.0
    %130 = vmatpush1.msra.mxu0 0.0
    %131 = vmatprep.subr.mxu0 0.0
    %132 = vmatpush1.msra.mxu0 0.0
    %133 = vmatprep.subr.mxu0 0.0
    %134 = vmatpush1.msra.mxu0 0.0
    %135 = vmatprep.subr.mxu0 0.0
    %136 = vmatpush1.msra.mxu0 0.0
    %137 = vmatprep.subr.mxu0 0.0
    %138 = vmatpush1.msra.mxu0 0.0
    %139 = vmatprep.subr.mxu0 0.0
    %140 = vmatpush1.msra.mxu0 0.0
    %141 = vmatprep.subr.mxu0 0.0
    %142 = vmatpush1.msra.mxu0 0.0
    %143 = vmatprep.subr.mxu0 0.0
    %144 = vmatpush1.msra.mxu0 0.0
    %145 = vmatprep.subr.mxu0 0.0
    %146 = vmatpush1.msra.mxu0 0.0
    %147 = vmatprep.subr.mxu0 0.0
    %148 = vmatpush1.msra.mxu0 0.0
    %149 = vmatprep.subr.mxu0 0.0
    %150 = vmatpush1.msra.mxu0 0.0
    %151 = vmatprep.subr.mxu0 0.0
    %152 = vmatpush1.msra.mxu0 0.0
    %153 = vmatprep.subr.mxu0 0.0
    %154 = vmatpush1.msra.mxu0 0.0
    %155 = vmatprep.subr.mxu0 0.0
    %156 = vmatpush1.msra.mxu0 0.0
    %157 = vmatprep.subr.mxu0 0.0
    %158 = vmatpush1.msra.mxu0 0.0
    %159 = vmatprep.subr.mxu0 0.0
    %160 = vmatpush1.msra.mxu0 0.0
    %161 = vmatprep.subr.mxu0 0.0
    %162 = vmatpush1.msra.mxu0 0.0
    %163 = vmatprep.subr.mxu0 0.0
    %164 = vmatpush1.msra.mxu0 0.0
    %165 = vmatprep.subr.mxu0 0.0
    %166 = vmatpush1.msra.mxu0 0.0
    %167 = vmatprep.mubr.f32.mxu0 0.0
    %168 = vmatmul.mubr.f32.gmra.mrb[0].mxu0 %v98
    %v169 = vpop.f32.mrb[0].mxu0
    %v170 = vadd.f32 %v89, %v169
    %v171 = vpop.f32.mrb[0].mxu0
    %v172 = vadd.f32 %v93, %v171
    %173 = vmatprep.mubr.f32.mxu0 0.0
    %174 = vmatmul.mubr.f32.gmra.mrb[0].mxu0 %v101
    %v175 = vpop.f32.mrb[0].mxu0
    %v176 = vadd.f32 %v89, %v175
    %v177 = vpop.f32.mrb[0].mxu0
    %v178 = vadd.f32 %v93, %v177
    %179 = vdwg.mxu0
    %vm180 = vcmask 523264
    %v182 = vsel %vm180, 0.0, 0
    %184 = vmatprep.subr.mxu0 %v68
    %185 = vmatpush1.msra.mxu0 %v67
    %186 = vmatprep.subr.mxu0 %v70
    %187 = vmatpush1.msra.mxu0 %v69
    %188 = vmatprep.subr.mxu0 %v72
    %189 = vmatpush1.msra.mxu0 %v71
    %190 = vmatprep.subr.mxu0 %v74
    %191 = vmatpush1.msra.mxu0 %v73
    %192 = vmatprep.subr.mxu0 %v76
    %193 = vmatpush1.msra.mxu0 %v75
    %194 = vmatprep.subr.mxu0 %v78
    %195 = vmatpush1.msra.mxu0 %v77
    %196 = vmatprep.subr.mxu0 %v80
    %197 = vmatpush1.msra.mxu0 %v79
    %198 = vmatprep.subr.mxu0 %v82
    %199 = vmatpush1.msra.mxu0 %v81
    %200 = vmatprep.subr.mxu0 0.0
    %201 = vmatpush1.msra.mxu0 0.0
    %202 = vmatprep.subr.mxu0 0.0
    %203 = vmatpush1.msra.mxu0 0.0
    %204 = vmatprep.subr.mxu0 0.0
    %205 = vmatpush1.msra.mxu0 0.0
    %206 = vmatprep.subr.mxu0 0.0
    %207 = vmatpush1.msra.mxu0 0.0
    %208 = vmatprep.subr.mxu0 0.0
    %209 = vmatpush1.msra.mxu0 0.0
    %210 = vmatprep.subr.mxu0 0.0
    %211 = vmatpush1.msra.mxu0 0.0
    %212 = vmatprep.subr.mxu0 0.0
    %213 = vmatpush1.msra.mxu0 0.0
    %214 = vmatprep.subr.mxu0 0.0
    %215 = vmatpush1.msra.mxu0 0.0
    %216 = vmatprep.subr.mxu0 0.0
    %217 = vmatpush1.msra.mxu0 0.0
    %218 = vmatprep.subr.mxu0 0.0
    %219 = vmatpush1.msra.mxu0 0.0
    %220 = vmatprep.subr.mxu0 0.0
    %221 = vmatpush1.msra.mxu0 0.0
    %222 = vmatprep.subr.mxu0 0.0
    %223 = vmatpush1.msra.mxu0 0.0
    %224 = vmatprep.subr.mxu0 0.0
    %225 = vmatpush1.msra.mxu0 0.0
    %226 = vmatprep.subr.mxu0 0.0
    %227 = vmatpush1.msra.mxu0 0.0
    %228 = vmatprep.subr.mxu0 0.0
    %229 = vmatpush1.msra.mxu0 0.0
    %230 = vmatprep.subr.mxu0 0.0
    %231 = vmatpush1.msra.mxu0 0.0
    %232 = vmatprep.subr.mxu0 0.0
    %233 = vmatpush1.msra.mxu0 0.0
    %234 = vmatprep.subr.mxu0 0.0
    %235 = vmatpush1.msra.mxu0 0.0
    %236 = vmatprep.subr.mxu0 0.0
    %237 = vmatpush1.msra.mxu0 0.0
    %238 = vmatprep.subr.mxu0 0.0
    %239 = vmatpush1.msra.mxu0 0.0
    %240 = vmatprep.subr.mxu0 0.0
    %241 = vmatpush1.msra.mxu0 0.0
    %242 = vmatprep.subr.mxu0 0.0
    %243 = vmatpush1.msra.mxu0 0.0
    %244 = vmatprep.subr.mxu0 0.0
    %245 = vmatpush1.msra.mxu0 0.0
    %246 = vmatprep.subr.mxu0 0.0
    %247 = vmatpush1.msra.mxu0 0.0
    %248 = vmatprep.mubr.f32.mxu0 0.0
    %249 = vmatmul.mubr.f32.gmra.mrb[0].mxu0 %v182
    %v250 = vpop.f32.mrb[0].mxu0
    %v251 = vadd.f32 0.0, %v250
    %v252 = vpop.f32.mrb[0].mxu0
    %v253 = vadd.f32 0.0, %v252
    %254 = vdwg.mxu0
    %v255 = vadd.f32 %v170, %v251
    %v256 = vadd.f32 %v172, %v253
    %v257 = vxor.u32 %v255, 2147483648
    %v258 = vxor.u32 %v256, 2147483648
    %v259 = vmul.f32 %v257, 1.442695
    %v260 = vpow.pop %v259
    %v261 = vmul.f32 %v258, 1.442695
    %v262 = vpow.pop %v261
    %v263 = vadd.f32 %v260, 1.0
    %v264 = vadd.f32 %v262, 1.0
    %v265 = vrcp.pop %v263
    %v266 = vmul.f32 1.0, %v265
    %v267 = vrcp.pop %v264
    %v268 = vmul.f32 1.0, %v267
    %v269 = vtanh.pop %v256
    %v270 = vmul.f32 %v266, 0.0
    %v271 = vmul.f32 %v266, %v269
    %273 = vrot.lane.b32.xlu0 %v271, 64
    %v274 = vpop.permute.xlu0 %273
    %v276 = vadd.f32 %v270, %v274
    %v277 = vtanh.pop %v276
    %v278 = vmul.f32 %v268, %v277
    %280 = vrot.lane.b32.xlu0 %v278, 64
    %v281 = vpop.permute.xlu0 %280
    %v282 = vsel %vm180, %v281, 0
    %284 = vmatprep.subr.mxu0 %v68
    %285 = vmatpush1.msra.mxu0 %v67
    %286 = vmatprep.subr.mxu0 %v70
    %287 = vmatpush1.msra.mxu0 %v69
    %288 = vmatprep.subr.mxu0 %v72
    %289 = vmatpush1.msra.mxu0 %v71
    %290 = vmatprep.subr.mxu0 %v74
    %291 = vmatpush1.msra.mxu0 %v73
    %292 = vmatprep.subr.mxu0 %v76
    %293 = vmatpush1.msra.mxu0 %v75
    %294 = vmatprep.subr.mxu0 %v78
    %295 = vmatpush1.msra.mxu0 %v77
    %296 = vmatprep.subr.mxu0 %v80
    %297 = vmatpush1.msra.mxu0 %v79
    %298 = vmatprep.subr.mxu0 %v82
    %299 = vmatpush1.msra.mxu0 %v81
    %300 = vmatprep.subr.mxu0 0.0
    %301 = vmatpush1.msra.mxu0 0.0
    %302 = vmatprep.subr.mxu0 0.0
    %303 = vmatpush1.msra.mxu0 0.0
    %304 = vmatprep.subr.mxu0 0.0
    %305 = vmatpush1.msra.mxu0 0.0
    %306 = vmatprep.subr.mxu0 0.0
    %307 = vmatpush1.msra.mxu0 0.0
    %308 = vmatprep.subr.mxu0 0.0
    %309 = vmatpush1.msra.mxu0 0.0
    %310 = vmatprep.subr.mxu0 0.0
    %311 = vmatpush1.msra.mxu0 0.0
    %312 = vmatprep.subr.mxu0 0.0
    %313 = vmatpush1.msra.mxu0 0.0
    %314 = vmatprep.subr.mxu0 0.0
    %315 = vmatpush1.msra.mxu0 0.0
    %316 = vmatprep.subr.mxu0 0.0
    %317 = vmatpush1.msra.mxu0 0.0
    %318 = vmatprep.subr.mxu0 0.0
    %319 = vmatpush1.msra.mxu0 0.0
    %320 = vmatprep.subr.mxu0 0.0
    %321 = vmatpush1.msra.mxu0 0.0
    %322 = vmatprep.subr.mxu0 0.0
    %323 = vmatpush1.msra.mxu0 0.0
    %324 = vmatprep.subr.mxu0 0.0
    %325 = vmatpush1.msra.mxu0 0.0
    %326 = vmatprep.subr.mxu0 0.0
    %327 = vmatpush1.msra.mxu0 0.0
    %328 = vmatprep.subr.mxu0 0.0
    %329 = vmatpush1.msra.mxu0 0.0
    %330 = vmatprep.subr.mxu0 0.0
    %331 = vmatpush1.msra.mxu0 0.0
    %332 = vmatprep.subr.mxu0 0.0
    %333 = vmatpush1.msra.mxu0 0.0
    %334 = vmatprep.subr.mxu0 0.0
    %335 = vmatpush1.msra.mxu0 0.0
    %336 = vmatprep.subr.mxu0 0.0
    %337 = vmatpush1.msra.mxu0 0.0
    %338 = vmatprep.subr.mxu0 0.0
    %339 = vmatpush1.msra.mxu0 0.0
    %340 = vmatprep.subr.mxu0 0.0
    %341 = vmatpush1.msra.mxu0 0.0
    %342 = vmatprep.subr.mxu0 0.0
    %343 = vmatpush1.msra.mxu0 0.0
    %344 = vmatprep.subr.mxu0 0.0
    %345 = vmatpush1.msra.mxu0 0.0
    %346 = vmatprep.subr.mxu0 0.0
    %347 = vmatpush1.msra.mxu0 0.0
    %348 = vmatprep.mubr.f32.mxu0 0.0
    %349 = vmatmul.mubr.f32.gmra.mrb[0].mxu0 %v282
    %v350 = vpop.f32.mrb[0].mxu0
    %v351 = vadd.f32 0.0, %v350
    %v352 = vpop.f32.mrb[0].mxu0
    %v353 = vadd.f32 0.0, %v352
    %354 = vdwg.mxu0
    %v357 = vrot.slane %v351, 6
    %v358 = vrot.slane %v353, 6
    %v361 = vadd.f32 %v170, %v357
    %v362 = vadd.f32 %v172, %v358
    %v363 = vxor.u32 %v361, 2147483648
    %v364 = vxor.u32 %v362, 2147483648
    %v365 = vmul.f32 %v363, 1.442695
    %v366 = vpow.pop %v365
    %v367 = vmul.f32 %v364, 1.442695
    %v368 = vpow.pop %v367
    %v369 = vadd.f32 %v366, 1.0
    %v370 = vadd.f32 %v368, 1.0
    %v371 = vrcp.pop %v369
    %v372 = vmul.f32 1.0, %v371
    %v373 = vrcp.pop %v370
    %v374 = vmul.f32 1.0, %v373
    %v375 = vtanh.pop %v362
    %v377 = vrot.slane %v276, 6
    %v379 = vmul.f32 %v372, %v377
    %v380 = vmul.f32 %v372, %v375
    %382 = vrot.lane.b32.xlu0 %v380, 64
    %v383 = vpop.permute.xlu0 %382
    %v385 = vadd.f32 %v379, %v383
    %v386 = vtanh.pop %v385
    %v387 = vmul.f32 %v374, %v386
    %v389 = vrot.slane %v387, 2
    %390 = vrot.lane.b32.xlu0 %v389, 64
    %v391 = vpop.permute.xlu0 %390
    %v392 = vsel %vm180, %v391, 0
    %394 = vmatprep.subr.mxu0 %v68
    %395 = vmatpush1.msra.mxu0 %v67
    %396 = vmatprep.subr.mxu0 %v70
    %397 = vmatpush1.msra.mxu0 %v69
    %398 = vmatprep.subr.mxu0 %v72
    %399 = vmatpush1.msra.mxu0 %v71
    %400 = vmatprep.subr.mxu0 %v74
    %401 = vmatpush1.msra.mxu0 %v73
    %402 = vmatprep.subr.mxu0 %v76
    %403 = vmatpush1.msra.mxu0 %v75
    %404 = vmatprep.subr.mxu0 %v78
    %405 = vmatpush1.msra.mxu0 %v77
    %406 = vmatprep.subr.mxu0 %v80
    %407 = vmatpush1.msra.mxu0 %v79
    %408 = vmatprep.subr.mxu0 %v82
    %409 = vmatpush1.msra.mxu0 %v81
    %410 = vmatprep.subr.mxu0 0.0
    %411 = vmatpush1.msra.mxu0 0.0
    %412 = vmatprep.subr.mxu0 0.0
    %413 = vmatpush1.msra.mxu0 0.0
    %414 = vmatprep.subr.mxu0 0.0
    %415 = vmatpush1.msra.mxu0 0.0
    %416 = vmatprep.subr.mxu0 0.0
    %417 = vmatpush1.msra.mxu0 0.0
    %418 = vmatprep.subr.mxu0 0.0
    %419 = vmatpush1.msra.mxu0 0.0
    %420 = vmatprep.subr.mxu0 0.0
    %421 = vmatpush1.msra.mxu0 0.0
    %422 = vmatprep.subr.mxu0 0.0
    %423 = vmatpush1.msra.mxu0 0.0
    %424 = vmatprep.subr.mxu0 0.0
    %425 = vmatpush1.msra.mxu0 0.0
    %426 = vmatprep.subr.mxu0 0.0
    %427 = vmatpush1.msra.mxu0 0.0
    %428 = vmatprep.subr.mxu0 0.0
    %429 = vmatpush1.msra.mxu0 0.0
    %430 = vmatprep.subr.mxu0 0.0
    %431 = vmatpush1.msra.mxu0 0.0
    %432 = vmatprep.subr.mxu0 0.0
    %433 = vmatpush1.msra.mxu0 0.0
    %434 = vmatprep.subr.mxu0 0.0
    %435 = vmatpush1.msra.mxu0 0.0
    %436 = vmatprep.subr.mxu0 0.0
    %437 = vmatpush1.msra.mxu0 0.0
    %438 = vmatprep.subr.mxu0 0.0
    %439 = vmatpush1.msra.mxu0 0.0
    %440 = vmatprep.subr.mxu0 0.0
    %441 = vmatpush1.msra.mxu0 0.0
    %442 = vmatprep.subr.mxu0 0.0
    %443 = vmatpush1.msra.mxu0 0.0
    %444 = vmatprep.subr.mxu0 0.0
    %445 = vmatpush1.msra.mxu0 0.0
    %446 = vmatprep.subr.mxu0 0.0
    %447 = vmatpush1.msra.mxu0 0.0
    %448 = vmatprep.subr.mxu0 0.0
    %449 = vmatpush1.msra.mxu0 0.0
    %450 = vmatprep.subr.mxu0 0.0
    %451 = vmatpush1.msra.mxu0 0.0
    %452 = vmatprep.subr.mxu0 0.0
    %453 = vmatpush1.msra.mxu0 0.0
    %454 = vmatprep.subr.mxu0 0.0
    %455 = vmatpush1.msra.mxu0 0.0
    %456 = vmatprep.subr.mxu0 0.0
    %457 = vmatpush1.msra.mxu0 0.0
    %458 = vmatprep.mubr.f32.mxu0 0.0
    %459 = vmatmul.mubr.f32.gmra.mrb[0].mxu0 %v392
    %v460 = vpop.f32.mrb[0].mxu0
    %v461 = vadd.f32 0.0, %v460
    %v462 = vpop.f32.mrb[0].mxu0
    %v463 = vadd.f32 0.0, %v462
    %464 = vdwg.mxu0
    %v467 = vrot.slane %v461, 4
    %v468 = vrot.slane %v463, 4
    %v471 = vadd.f32 %v170, %v467
    %v472 = vadd.f32 %v172, %v468
    %v473 = vxor.u32 %v471, 2147483648
    %v474 = vxor.u32 %v472, 2147483648
    %v475 = vmul.f32 %v473, 1.442695
    %v476 = vpow.pop %v475
    %v477 = vmul.f32 %v474, 1.442695
    %v478 = vpow.pop %v477
    %v479 = vadd.f32 %v476, 1.0
    %v480 = vadd.f32 %v478, 1.0
    %v481 = vrcp.pop %v479
    %v482 = vmul.f32 1.0, %v481
    %v483 = vrcp.pop %v480
    %v484 = vmul.f32 1.0, %v483
    %v485 = vtanh.pop %v472
    %v487 = vrot.slane %v385, 6
    %v489 = vmul.f32 %v482, %v487
    %v490 = vmul.f32 %v482, %v485
    %492 = vrot.lane.b32.xlu0 %v490, 64
    %v493 = vpop.permute.xlu0 %492
    %v495 = vadd.f32 %v489, %v493
    %v496 = vtanh.pop %v495
    %v497 = vmul.f32 %v484, %v496
    %v499 = vrot.slane %v497, 4
    %500 = vrot.lane.b32.xlu0 %v499, 64
    %v501 = vpop.permute.xlu0 %500
    %v502 = vsel %vm180, %v501, 0
    %504 = vmatprep.subr.mxu0 %v68
    %505 = vmatpush1.msra.mxu0 %v67
    %506 = vmatprep.subr.mxu0 %v70
    %507 = vmatpush1.msra.mxu0 %v69
    %508 = vmatprep.subr.mxu0 %v72
    %509 = vmatpush1.msra.mxu0 %v71
    %510 = vmatprep.subr.mxu0 %v74
    %511 = vmatpush1.msra.mxu0 %v73
    %512 = vmatprep.subr.mxu0 %v76
    %513 = vmatpush1.msra.mxu0 %v75
    %514 = vmatprep.subr.mxu0 %v78
    %515 = vmatpush1.msra.mxu0 %v77
    %516 = vmatprep.subr.mxu0 %v80
    %517 = vmatpush1.msra.mxu0 %v79
    %518 = vmatprep.subr.mxu0 %v82
    %519 = vmatpush1.msra.mxu0 %v81
    %520 = vmatprep.subr.mxu0 0.0
    %521 = vmatpush1.msra.mxu0 0.0
    %522 = vmatprep.subr.mxu0 0.0
    %523 = vmatpush1.msra.mxu0 0.0
    %524 = vmatprep.subr.mxu0 0.0
    %525 = vmatpush1.msra.mxu0 0.0
    %526 = vmatprep.subr.mxu0 0.0
    %527 = vmatpush1.msra.mxu0 0.0
    %528 = vmatprep.subr.mxu0 0.0
    %529 = vmatpush1.msra.mxu0 0.0
    %530 = vmatprep.subr.mxu0 0.0
    %531 = vmatpush1.msra.mxu0 0.0
    %532 = vmatprep.subr.mxu0 0.0
    %533 = vmatpush1.msra.mxu0 0.0
    %534 = vmatprep.subr.mxu0 0.0
    %535 = vmatpush1.msra.mxu0 0.0
    %536 = vmatprep.subr.mxu0 0.0
    %537 = vmatpush1.msra.mxu0 0.0
    %538 = vmatprep.subr.mxu0 0.0
    %539 = vmatpush1.msra.mxu0 0.0
    %540 = vmatprep.subr.mxu0 0.0
    %541 = vmatpush1.msra.mxu0 0.0
    %542 = vmatprep.subr.mxu0 0.0
    %543 = vmatpush1.msra.mxu0 0.0
    %544 = vmatprep.subr.mxu0 0.0
    %545 = vmatpush1.msra.mxu0 0.0
    %546 = vmatprep.subr.mxu0 0.0
    %547 = vmatpush1.msra.mxu0 0.0
    %548 = vmatprep.subr.mxu0 0.0
    %549 = vmatpush1.msra.mxu0 0.0
    %550 = vmatprep.subr.mxu0 0.0
    %551 = vmatpush1.msra.mxu0 0.0
    %552 = vmatprep.subr.mxu0 0.0
    %553 = vmatpush1.msra.mxu0 0.0
    %554 = vmatprep.subr.mxu0 0.0
    %555 = vmatpush1.msra.mxu0 0.0
    %556 = vmatprep.subr.mxu0 0.0
    %557 = vmatpush1.msra.mxu0 0.0
    %558 = vmatprep.subr.mxu0 0.0
    %559 = vmatpush1.msra.mxu0 0.0
    %560 = vmatprep.subr.mxu0 0.0
    %561 = vmatpush1.msra.mxu0 0.0
    %562 = vmatprep.subr.mxu0 0.0
    %563 = vmatpush1.msra.mxu0 0.0
    %564 = vmatprep.subr.mxu0 0.0
    %565 = vmatpush1.msra.mxu0 0.0
    %566 = vmatprep.subr.mxu0 0.0
    %567 = vmatpush1.msra.mxu0 0.0
    %568 = vmatprep.mubr.f32.mxu0 0.0
    %569 = vmatmul.mubr.f32.gmra.mrb[0].mxu0 %v502
    %v570 = vpop.f32.mrb[0].mxu0
    %v571 = vadd.f32 0.0, %v570
    %v572 = vpop.f32.mrb[0].mxu0
    %v573 = vadd.f32 0.0, %v572
    %574 = vdwg.mxu0
    %v577 = vrot.slane %v571, 2
    %v578 = vrot.slane %v573, 2
    %v581 = vadd.f32 %v170, %v577
    %v582 = vadd.f32 %v172, %v578
    %v583 = vxor.u32 %v581, 2147483648
    %v584 = vxor.u32 %v582, 2147483648
    %v585 = vmul.f32 %v583, 1.442695
    %v586 = vpow.pop %v585
    %v587 = vmul.f32 %v584, 1.442695
    %v588 = vpow.pop %v587
    %v589 = vadd.f32 %v586, 1.0
    %v590 = vadd.f32 %v588, 1.0
    %v591 = vrcp.pop %v589
    %v592 = vmul.f32 1.0, %v591
    %v593 = vrcp.pop %v590
    %v594 = vmul.f32 1.0, %v593
    %v595 = vtanh.pop %v582
    %v597 = vrot.slane %v495, 6
    %v599 = vmul.f32 %v592, %v597
    %v600 = vmul.f32 %v592, %v595
    %602 = vrot.lane.b32.xlu0 %v600, 64
    %v603 = vpop.permute.xlu0 %602
    %v605 = vadd.f32 %v599, %v603
    %v606 = vtanh.pop %v605
    %v607 = vmul.f32 %v594, %v606
    %v609 = vrot.slane %v607, 6
    %610 = vrot.lane.b32.xlu0 %v609, 64
    %v611 = vpop.permute.xlu0 %610
    %v612 = vsel %vm180, %v611, 0
    %614 = vmatprep.subr.mxu0 %v68
    %615 = vmatpush1.msra.mxu0 %v67
    %616 = vmatprep.subr.mxu0 %v70
    %617 = vmatpush1.msra.mxu0 %v69
    %618 = vmatprep.subr.mxu0 %v72
    %619 = vmatpush1.msra.mxu0 %v71
    %620 = vmatprep.subr.mxu0 %v74
    %621 = vmatpush1.msra.mxu0 %v73
    %622 = vmatprep.subr.mxu0 %v76
    %623 = vmatpush1.msra.mxu0 %v75
    %624 = vmatprep.subr.mxu0 %v78
    %625 = vmatpush1.msra.mxu0 %v77
    %626 = vmatprep.subr.mxu0 %v80
    %627 = vmatpush1.msra.mxu0 %v79
    %628 = vmatprep.subr.mxu0 %v82
    %629 = vmatpush1.msra.mxu0 %v81
    %630 = vmatprep.subr.mxu0 0.0
    %631 = vmatpush1.msra.mxu0 0.0
    %632 = vmatprep.subr.mxu0 0.0
    %633 = vmatpush1.msra.mxu0 0.0
    %634 = vmatprep.subr.mxu0 0.0
    %635 = vmatpush1.msra.mxu0 0.0
    %636 = vmatprep.subr.mxu0 0.0
    %637 = vmatpush1.msra.mxu0 0.0
    %638 = vmatprep.subr.mxu0 0.0
    %639 = vmatpush1.msra.mxu0 0.0
    %640 = vmatprep.subr.mxu0 0.0
    %641 = vmatpush1.msra.mxu0 0.0
    %642 = vmatprep.subr.mxu0 0.0
    %643 = vmatpush1.msra.mxu0 0.0
    %644 = vmatprep.subr.mxu0 0.0
    %645 = vmatpush1.msra.mxu0 0.0
    %646 = vmatprep.subr.mxu0 0.0
    %647 = vmatpush1.msra.mxu0 0.0
    %648 = vmatprep.subr.mxu0 0.0
    %649 = vmatpush1.msra.mxu0 0.0
    %650 = vmatprep.subr.mxu0 0.0
    %651 = vmatpush1.msra.mxu0 0.0
    %652 = vmatprep.subr.mxu0 0.0
    %653 = vmatpush1.msra.mxu0 0.0
    %654 = vmatprep.subr.mxu0 0.0
    %655 = vmatpush1.msra.mxu0 0.0
    %656 = vmatprep.subr.mxu0 0.0
    %657 = vmatpush1.msra.mxu0 0.0
    %658 = vmatprep.subr.mxu0 0.0
    %659 = vmatpush1.msra.mxu0 0.0
    %660 = vmatprep.subr.mxu0 0.0
    %661 = vmatpush1.msra.mxu0 0.0
    %662 = vmatprep.subr.mxu0 0.0
    %663 = vmatpush1.msra.mxu0 0.0
    %664 = vmatprep.subr.mxu0 0.0
    %665 = vmatpush1.msra.mxu0 0.0
    %666 = vmatprep.subr.mxu0 0.0
    %667 = vmatpush1.msra.mxu0 0.0
    %668 = vmatprep.subr.mxu0 0.0
    %669 = vmatpush1.msra.mxu0 0.0
    %670 = vmatprep.subr.mxu0 0.0
    %671 = vmatpush1.msra.mxu0 0.0
    %672 = vmatprep.subr.mxu0 0.0
    %673 = vmatpush1.msra.mxu0 0.0
    %674 = vmatprep.subr.mxu0 0.0
    %675 = vmatpush1.msra.mxu0 0.0
    %676 = vmatprep.subr.mxu0 0.0
    %677 = vmatpush1.msra.mxu0 0.0
    %678 = vmatprep.mubr.f32.mxu0 0.0
    %679 = vmatmul.mubr.f32.gmra.mrb[0].mxu0 %v612
    %v680 = vpop.f32.mrb[0].mxu0
    %v681 = vadd.f32 0.0, %v680
    %v682 = vpop.f32.mrb[0].mxu0
    %v683 = vadd.f32 0.0, %v682
    %684 = vdwg.mxu0
    %v685 = vadd.f32 %v176, %v681
    %v686 = vadd.f32 %v178, %v683
    %v687 = vxor.u32 %v685, 2147483648
    %v688 = vxor.u32 %v686, 2147483648
    %v689 = vmul.f32 %v687, 1.442695
    %v690 = vpow.pop %v689
    %v691 = vmul.f32 %v688, 1.442695
    %v692 = vpow.pop %v691
    %v693 = vadd.f32 %v690, 1.0
    %v694 = vadd.f32 %v692, 1.0
    %v695 = vrcp.pop %v693
    %v696 = vmul.f32 1.0, %v695
    %v697 = vrcp.pop %v694
    %v698 = vmul.f32 1.0, %v697
    %v699 = vtanh.pop %v686
    %v701 = vrot.slane %v605, 6
    %v703 = vmul.f32 %v696, %v701
    %v704 = vmul.f32 %v696, %v699
    %706 = vrot.lane.b32.xlu0 %v704, 64
    %v707 = vpop.permute.xlu0 %706
    %v709 = vadd.f32 %v703, %v707
    %v710 = vtanh.pop %v709
    %v711 = vmul.f32 %v698, %v710
    %713 = vrot.lane.b32.xlu0 %v711, 64
    %v714 = vpop.permute.xlu0 %713
    %v715 = vsel %vm180, %v714, 0
    %717 = vmatprep.subr.mxu0 %v68
    %718 = vmatpush1.msra.mxu0 %v67
    %719 = vmatprep.subr.mxu0 %v70
    %720 = vmatpush1.msra.mxu0 %v69
    %721 = vmatprep.subr.mxu0 %v72
    %722 = vmatpush1.msra.mxu0 %v71
    %723 = vmatprep.subr.mxu0 %v74
    %724 = vmatpush1.msra.mxu0 %v73
    %725 = vmatprep.subr.mxu0 %v76
    %726 = vmatpush1.msra.mxu0 %v75
    %727 = vmatprep.subr.mxu0 %v78
    %728 = vmatpush1.msra.mxu0 %v77
    %729 = vmatprep.subr.mxu0 %v80
    %730 = vmatpush1.msra.mxu0 %v79
    %731 = vmatprep.subr.mxu0 %v82
    %732 = vmatpush1.msra.mxu0 %v81
    %733 = vmatprep.subr.mxu0 0.0
    %734 = vmatpush1.msra.mxu0 0.0
    %735 = vmatprep.subr.mxu0 0.0
    %736 = vmatpush1.msra.mxu0 0.0
    %737 = vmatprep.subr.mxu0 0.0
    %738 = vmatpush1.msra.mxu0 0.0
    %739 = vmatprep.subr.mxu0 0.0
    %740 = vmatpush1.msra.mxu0 0.0
    %741 = vmatprep.subr.mxu0 0.0
    %742 = vmatpush1.msra.mxu0 0.0
    %743 = vmatprep.subr.mxu0 0.0
    %744 = vmatpush1.msra.mxu0 0.0
    %745 = vmatprep.subr.mxu0 0.0
    %746 = vmatpush1.msra.mxu0 0.0
    %747 = vmatprep.subr.mxu0 0.0
    %748 = vmatpush1.msra.mxu0 0.0
    %749 = vmatprep.subr.mxu0 0.0
    %750 = vmatpush1.msra.mxu0 0.0
    %751 = vmatprep.subr.mxu0 0.0
    %752 = vmatpush1.msra.mxu0 0.0
    %753 = vmatprep.subr.mxu0 0.0
    %754 = vmatpush1.msra.mxu0 0.0
    %755 = vmatprep.subr.mxu0 0.0
    %756 = vmatpush1.msra.mxu0 0.0
    %757 = vmatprep.subr.mxu0 0.0
    %758 = vmatpush1.msra.mxu0 0.0
    %759 = vmatprep.subr.mxu0 0.0
    %760 = vmatpush1.msra.mxu0 0.0
    %761 = vmatprep.subr.mxu0 0.0
    %762 = vmatpush1.msra.mxu0 0.0
    %763 = vmatprep.subr.mxu0 0.0
    %764 = vmatpush1.msra.mxu0 0.0
    %765 = vmatprep.subr.mxu0 0.0
    %766 = vmatpush1.msra.mxu0 0.0
    %767 = vmatprep.subr.mxu0 0.0
    %768 = vmatpush1.msra.mxu0 0.0
    %769 = vmatprep.subr.mxu0 0.0
    %770 = vmatpush1.msra.mxu0 0.0
    %771 = vmatprep.subr.mxu0 0.0
    %772 = vmatpush1.msra.mxu0 0.0
    %773 = vmatprep.subr.mxu0 0.0
    %774 = vmatpush1.msra.mxu0 0.0
    %775 = vmatprep.subr.mxu0 0.0
    %776 = vmatpush1.msra.mxu0 0.0
    %777 = vmatprep.subr.mxu0 0.0
    %778 = vmatpush1.msra.mxu0 0.0
    %779 = vmatprep.subr.mxu0 0.0
    %780 = vmatpush1.msra.mxu0 0.0
    %781 = vmatprep.mubr.f32.mxu0 0.0
    %782 = vmatmul.mubr.f32.gmra.mrb[0].mxu0 %v715
    %v783 = vpop.f32.mrb[0].mxu0
    %v784 = vadd.f32 0.0, %v783
    %v785 = vpop.f32.mrb[0].mxu0
    %v786 = vadd.f32 0.0, %v785
    %787 = vdwg.mxu0
    %v790 = vrot.slane %v784, 6
    %v791 = vrot.slane %v786, 6
    %v794 = vadd.f32 %v176, %v790
    %v795 = vadd.f32 %v178, %v791
    %v796 = vxor.u32 %v794, 2147483648
    %v797 = vxor.u32 %v795, 2147483648
    %v798 = vmul.f32 %v796, 1.442695
    %v799 = vpow.pop %v798
    %v800 = vmul.f32 %v797, 1.442695
    %v801 = vpow.pop %v800
    %v802 = vadd.f32 %v799, 1.0
    %v803 = vadd.f32 %v801, 1.0
    %v804 = vrcp.pop %v802
    %v805 = vmul.f32 1.0, %v804
    %v806 = vrcp.pop %v803
    %v807 = vmul.f32 1.0, %v806
    %v808 = vtanh.pop %v795
    %v810 = vrot.slane %v709, 6
    %v812 = vmul.f32 %v805, %v810
    %v813 = vmul.f32 %v805, %v808
    %815 = vrot.lane.b32.xlu0 %v813, 64
    %v816 = vpop.permute.xlu0 %815
    %v818 = vadd.f32 %v812, %v816
    %v819 = vtanh.pop %v818
    %v820 = vmul.f32 %v807, %v819
    %v822 = vrot.slane %v820, 2
    %823 = vrot.lane.b32.xlu0 %v822, 64
    %v824 = vpop.permute.xlu0 %823
    %v825 = vsel %vm180, %v824, 0
    %827 = vmatprep.subr.mxu0 %v68
    %828 = vmatpush1.msra.mxu0 %v67
    %829 = vmatprep.subr.mxu0 %v70
    %830 = vmatpush1.msra.mxu0 %v69
    %831 = vmatprep.subr.mxu0 %v72
    %832 = vmatpush1.msra.mxu0 %v71
    %833 = vmatprep.subr.mxu0 %v74
    %834 = vmatpush1.msra.mxu0 %v73
    %835 = vmatprep.subr.mxu0 %v76
    %836 = vmatpush1.msra.mxu0 %v75
    %837 = vmatprep.subr.mxu0 %v78
    %838 = vmatpush1.msra.mxu0 %v77
    %839 = vmatprep.subr.mxu0 %v80
    %840 = vmatpush1.msra.mxu0 %v79
    %841 = vmatprep.subr.mxu0 %v82
    %842 = vmatpush1.msra.mxu0 %v81
    %843 = vmatprep.subr.mxu0 0.0
    %844 = vmatpush1.msra.mxu0 0.0
    %845 = vmatprep.subr.mxu0 0.0
    %846 = vmatpush1.msra.mxu0 0.0
    %847 = vmatprep.subr.mxu0 0.0
    %848 = vmatpush1.msra.mxu0 0.0
    %849 = vmatprep.subr.mxu0 0.0
    %850 = vmatpush1.msra.mxu0 0.0
    %851 = vmatprep.subr.mxu0 0.0
    %852 = vmatpush1.msra.mxu0 0.0
    %853 = vmatprep.subr.mxu0 0.0
    %854 = vmatpush1.msra.mxu0 0.0
    %855 = vmatprep.subr.mxu0 0.0
    %856 = vmatpush1.msra.mxu0 0.0
    %857 = vmatprep.subr.mxu0 0.0
    %858 = vmatpush1.msra.mxu0 0.0
    %859 = vmatprep.subr.mxu0 0.0
    %860 = vmatpush1.msra.mxu0 0.0
    %861 = vmatprep.subr.mxu0 0.0
    %862 = vmatpush1.msra.mxu0 0.0
    %863 = vmatprep.subr.mxu0 0.0
    %864 = vmatpush1.msra.mxu0 0.0
    %865 = vmatprep.subr.mxu0 0.0
    %866 = vmatpush1.msra.mxu0 0.0
    %867 = vmatprep.subr.mxu0 0.0
    %868 = vmatpush1.msra.mxu0 0.0
    %869 = vmatprep.subr.mxu0 0.0
    %870 = vmatpush1.msra.mxu0 0.0
    %871 = vmatprep.subr.mxu0 0.0
    %872 = vmatpush1.msra.mxu0 0.0
    %873 = vmatprep.subr.mxu0 0.0
    %874 = vmatpush1.msra.mxu0 0.0
    %875 = vmatprep.subr.mxu0 0.0
    %876 = vmatpush1.msra.mxu0 0.0
    %877 = vmatprep.subr.mxu0 0.0
    %878 = vmatpush1.msra.mxu0 0.0
    %879 = vmatprep.subr.mxu0 0.0
    %880 = vmatpush1.msra.mxu0 0.0
    %881 = vmatprep.subr.mxu0 0.0
    %882 = vmatpush1.msra.mxu0 0.0
    %883 = vmatprep.subr.mxu0 0.0
    %884 = vmatpush1.msra.mxu0 0.0
    %885 = vmatprep.subr.mxu0 0.0
    %886 = vmatpush1.msra.mxu0 0.0
    %887 = vmatprep.subr.mxu0 0.0
    %888 = vmatpush1.msra.mxu0 0.0
    %889 = vmatprep.subr.mxu0 0.0
    %890 = vmatpush1.msra.mxu0 0.0
    %891 = vmatprep.mubr.f32.mxu0 0.0
    %892 = vmatmul.mubr.f32.gmra.mrb[0].mxu0 %v825
    %v893 = vpop.f32.mrb[0].mxu0
    %v894 = vadd.f32 0.0, %v893
    %v895 = vpop.f32.mrb[0].mxu0
    %v896 = vadd.f32 0.0, %v895
    %897 = vdwg.mxu0
    %v900 = vrot.slane %v894, 4
    %v901 = vrot.slane %v896, 4
    %v904 = vadd.f32 %v176, %v900
    %v905 = vadd.f32 %v178, %v901
    %v906 = vxor.u32 %v904, 2147483648
    %v907 = vxor.u32 %v905, 2147483648
    %v908 = vmul.f32 %v906, 1.442695
    %v909 = vpow.pop %v908
    %v910 = vmul.f32 %v907, 1.442695
    %v911 = vpow.pop %v910
    %v912 = vadd.f32 %v909, 1.0
    %v913 = vadd.f32 %v911, 1.0
    %v914 = vrcp.pop %v912
    %v915 = vmul.f32 1.0, %v914
    %v916 = vrcp.pop %v913
    %v917 = vmul.f32 1.0, %v916
    %v918 = vtanh.pop %v905
    %v920 = vrot.slane %v818, 6
    %v922 = vmul.f32 %v915, %v920
    %v923 = vmul.f32 %v915, %v918
    %925 = vrot.lane.b32.xlu0 %v923, 64
    %v926 = vpop.permute.xlu0 %925
    %v928 = vadd.f32 %v922, %v926
    %v929 = vtanh.pop %v928
    %v930 = vmul.f32 %v917, %v929
    %v932 = vrot.slane %v930, 4
    %933 = vrot.lane.b32.xlu0 %v932, 64
    %v934 = vpop.permute.xlu0 %933
    %v935 = vsel %vm180, %v934, 0
    %937 = vmatprep.subr.mxu0 %v68
    %938 = vmatpush1.msra.mxu0 %v67
    %939 = vmatprep.subr.mxu0 %v70
    %940 = vmatpush1.msra.mxu0 %v69
    %941 = vmatprep.subr.mxu0 %v72
    %942 = vmatpush1.msra.mxu0 %v71
    %943 = vmatprep.subr.mxu0 %v74
    %944 = vmatpush1.msra.mxu0 %v73
    %945 = vmatprep.subr.mxu0 %v76
    %946 = vmatpush1.msra.mxu0 %v75
    %947 = vmatprep.subr.mxu0 %v78
    %948 = vmatpush1.msra.mxu0 %v77
    %949 = vmatprep.subr.mxu0 %v80
    %950 = vmatpush1.msra.mxu0 %v79
    %951 = vmatprep.subr.mxu0 %v82
    %952 = vmatpush1.msra.mxu0 %v81
    %953 = vmatprep.subr.mxu0 0.0
    %954 = vmatpush1.msra.mxu0 0.0
    %955 = vmatprep.subr.mxu0 0.0
    %956 = vmatpush1.msra.mxu0 0.0
    %957 = vmatprep.subr.mxu0 0.0
    %958 = vmatpush1.msra.mxu0 0.0
    %959 = vmatprep.subr.mxu0 0.0
    %960 = vmatpush1.msra.mxu0 0.0
    %961 = vmatprep.subr.mxu0 0.0
    %962 = vmatpush1.msra.mxu0 0.0
    %963 = vmatprep.subr.mxu0 0.0
    %964 = vmatpush1.msra.mxu0 0.0
    %965 = vmatprep.subr.mxu0 0.0
    %966 = vmatpush1.msra.mxu0 0.0
    %967 = vmatprep.subr.mxu0 0.0
    %968 = vmatpush1.msra.mxu0 0.0
    %969 = vmatprep.subr.mxu0 0.0
    %970 = vmatpush1.msra.mxu0 0.0
    %971 = vmatprep.subr.mxu0 0.0
    %972 = vmatpush1.msra.mxu0 0.0
    %973 = vmatprep.subr.mxu0 0.0
    %974 = vmatpush1.msra.mxu0 0.0
    %975 = vmatprep.subr.mxu0 0.0
    %976 = vmatpush1.msra.mxu0 0.0
    %977 = vmatprep.subr.mxu0 0.0
    %978 = vmatpush1.msra.mxu0 0.0
    %979 = vmatprep.subr.mxu0 0.0
    %980 = vmatpush1.msra.mxu0 0.0
    %981 = vmatprep.subr.mxu0 0.0
    %982 = vmatpush1.msra.mxu0 0.0
    %983 = vmatprep.subr.mxu0 0.0
    %984 = vmatpush1.msra.mxu0 0.0
    %985 = vmatprep.subr.mxu0 0.0
    %986 = vmatpush1.msra.mxu0 0.0
    %987 = vmatprep.subr.mxu0 0.0
    %988 = vmatpush1.msra.mxu0 0.0
    %989 = vmatprep.subr.mxu0 0.0
    %990 = vmatpush1.msra.mxu0 0.0
    %991 = vmatprep.subr.mxu0 0.0
    %992 = vmatpush1.msra.mxu0 0.0
    %993 = vmatprep.subr.mxu0 0.0
    %994 = vmatpush1.msra.mxu0 0.0
    %995 = vmatprep.subr.mxu0 0.0
    %996 = vmatpush1.msra.mxu0 0.0
    %997 = vmatprep.subr.mxu0 0.0
    %998 = vmatpush1.msra.mxu0 0.0
    %999 = vmatprep.subr.mxu0 0.0
    %1000 = vmatpush1.msra.mxu0 0.0
    %1001 = vmatprep.mubr.f32.mxu0 0.0
    %1002 = vmatmul.mubr.f32.gmra.mrb[0].mxu0 %v935
    %v1003 = vpop.f32.mrb[0].mxu0
    %v1004 = vadd.f32 0.0, %v1003
    %v1005 = vpop.f32.mrb[0].mxu0
    %v1006 = vadd.f32 0.0, %v1005
    %1007 = vdwg.mxu0
    %v1010 = vrot.slane %v1004, 2
    %v1011 = vrot.slane %v1006, 2
    %v1014 = vadd.f32 %v176, %v1010
    %v1015 = vadd.f32 %v178, %v1011
    %v1016 = vxor.u32 %v1014, 2147483648
    %v1017 = vxor.u32 %v1015, 2147483648
    %v1018 = vmul.f32 %v1016, 1.442695
    %v1019 = vpow.pop %v1018
    %v1020 = vmul.f32 %v1017, 1.442695
    %v1021 = vpow.pop %v1020
    %v1022 = vadd.f32 %v1019, 1.0
    %v1023 = vadd.f32 %v1021, 1.0
    %v1024 = vrcp.pop %v1022
    %v1025 = vmul.f32 1.0, %v1024
    %v1026 = vrcp.pop %v1023
    %v1027 = vmul.f32 1.0, %v1026
    %v1028 = vtanh.pop %v1015
    %v1030 = vrot.slane %v928, 6
    %v1032 = vmul.f32 %v1025, %v1030
    %v1033 = vmul.f32 %v1025, %v1028
    %1035 = vrot.lane.b32.xlu0 %v1033, 64
    %v1036 = vpop.permute.xlu0 %1035
    %v1038 = vadd.f32 %v1032, %v1036
    %v1039 = vtanh.pop %v1038
    %v1040 = vmul.f32 %v1027, %v1039
    %v1043 = vrot.slane %v1040, 6
    %1044 = vrot.lane.b32.xlu0 %v1043, 64
    %v1045 = vpop.permute.xlu0 %1044
    %v1047 = vsel %vm96, %v281, %v1045
    %1048 = vrot.lane.b32.xlu0 %v387, 64
    %v1049 = vpop.permute.xlu0 %1048
    %v1051 = vrot.slane %v930, 2
    %1052 = vrot.lane.b32.xlu0 %v1051, 64
    %v1053 = vpop.permute.xlu0 %1052
    %v1055 = vsel %vm96, %v1049, %v1053
    %1056 = vrot.lane.b32.xlu0 %v497, 64
    %v1057 = vpop.permute.xlu0 %1056
    %v1059 = vrot.slane %v820, 6
    %1060 = vrot.lane.b32.xlu0 %v1059, 64
    %v1061 = vpop.permute.xlu0 %1060
    %v1063 = vsel %vm96, %v1057, %v1061
    %1064 = vrot.lane.b32.xlu0 %v607, 64
    %v1065 = vpop.permute.xlu0 %1064
    %v1067 = vrot.slane %v711, 2
    %1068 = vrot.lane.b32.xlu0 %v1067, 64
    %v1069 = vpop.permute.xlu0 %1068
    %v1071 = vsel %vm96, %v1065, %v1069
    %v1074 = vsel %vm96, %v714, %v611
    %1075 = vrot.lane.b32.xlu0 %v820, 64
    %v1076 = vpop.permute.xlu0 %1075
    %v1078 = vrot.slane %v497, 2
    %1079 = vrot.lane.b32.xlu0 %v1078, 64
    %v1080 = vpop.permute.xlu0 %1079
    %v1082 = vsel %vm96, %v1076, %v1080
    %1083 = vrot.lane.b32.xlu0 %v930, 64
    %v1084 = vpop.permute.xlu0 %1083
    %v1086 = vrot.slane %v387, 6
    %1087 = vrot.lane.b32.xlu0 %v1086, 64
    %v1088 = vpop.permute.xlu0 %1087
    %v1090 = vsel %vm96, %v1084, %v1088
    %1091 = vrot.lane.b32.xlu0 %v1040, 64
    %v1092 = vpop.permute.xlu0 %1091
    %v1094 = vrot.slane %v278, 2
    %1095 = vrot.lane.b32.xlu0 %v1094, 64
    %v1096 = vpop.permute.xlu0 %1095
    %v1098 = vsel %vm96, %v1092, %v1096
    %v1100 = vrot.slane %v1055, 2
    %v1102 = vmax.f32 %v1047, %v1100
    %v1104 = vrot.slane %v1071, 2
    %v1106 = vmax.f32 %v1063, %v1104
    %v1108 = vrot.slane %v1082, 2
    %v1110 = vmax.f32 %v1074, %v1108
    %v1112 = vrot.slane %v1098, 2
    %v1114 = vmax.f32 %v1090, %v1112
    %s1115 = smul.u32 8, 25
    %s1116 = smul.u32 %s1115, 2
    %s1117 = sshll.u32 %s1116, 4
    %1118 = dma.done [#allocation4], %s1117
    %v1120 = vrot.slane %v1114, 4
    %1121 = vrot.lane.b32.xlu0 %v1120, 64
    %v1122 = vpop.permute.xlu0 %1121
    %v1124 = vsel %vm180, %v1102, %v1122
    %v1126 = vrot.slane %v1110, 4
    %1127 = vrot.lane.b32.xlu0 %v1126, 64
    %v1128 = vpop.permute.xlu0 %1127
    %v1130 = vsel %vm180, %v1106, %v1128
    %v1132 = vrot.slane %v1106, 4
    %1133 = vrot.lane.b32.xlu0 %v1132, 64
    %v1134 = vpop.permute.xlu0 %1133
    %v1136 = vsel %vm180, %v1110, %v1134
    %v1138 = vrot.slane %v1102, 4
    %1139 = vrot.lane.b32.xlu0 %v1138, 64
    %v1140 = vpop.permute.xlu0 %1139
    %v1142 = vsel %vm180, %v1114, %v1140
    %v1144 = vrot.slane %v1130, 2
    %v1147 = vrot.slane %v1136, 4
    %v1150 = vrot.slane %v1142, 6
    %vm1152 = vcmask 1041408
    %v1153 = vsel %vm1152, %v1124, %v1144
    %vm1154 = vcmask 1043456
    %v1155 = vsel %vm1154, %v1153, %v1147
    %vm1156 = vcmask 1045504
    %v1157 = vsel %vm1156, %v1155, %v1150
    %v1158 = vld [vmem:[#allocation2] sm:$0xff]
    %v1159 = vld [vmem:[#allocation2 + $0x8] sm:$0xff]
    %v1160 = vld [vmem:[#allocation2 + $0x10] sm:$0xff]
    %v1161 = vld [vmem:[#allocation2 + $0x18] sm:$0xff]
    %v1162 = vld [vmem:[#allocation2 + $0x20] sm:$0xff]
    %v1163 = vld [vmem:[#allocation2 + $0x28] sm:$0xff]
    %v1164 = vld [vmem:[#allocation2 + $0x30] sm:$0xff]
    %v1165 = vld [vmem:[#allocation2 + $0x38] sm:$0xff]
    %v1166 = vld [vmem:[#allocation2 + $0x40] sm:$0xff]
    %v1167 = vld [vmem:[#allocation2 + $0x48] sm:$0xff]
    %v1168 = vld [vmem:[#allocation2 + $0x50] sm:$0xff]
    %v1169 = vld [vmem:[#allocation2 + $0x58] sm:$0xff]
    %v1170 = vld [vmem:[#allocation2 + $0x60] sm:$0xff]
    %v1171 = vld [vmem:[#allocation2 + $0x68] sm:$0xff]
    %v1172 = vld [vmem:[#allocation2 + $0x70] sm:$0xff]
    %v1173 = vld [vmem:[#allocation2 + $0x78] sm:$0xff]
    %v1174 = vld [vmem:[#allocation2 + $0x80] sm:$0xff]
    %v1175 = vld [vmem:[#allocation2 + $0x88] sm:$0xff]
    %v1176 = vld [vmem:[#allocation2 + $0x90] sm:$0xff]
    %v1177 = vld [vmem:[#allocation2 + $0x98] sm:$0xff]
    %v1178 = vld [vmem:[#allocation2 + $0xa0] sm:$0xff]
    %v1179 = vld [vmem:[#allocation2 + $0xa8] sm:$0xff]
    %v1180 = vld [vmem:[#allocation2 + $0xb0] sm:$0xff]
    %v1181 = vld [vmem:[#allocation2 + $0xb8] sm:$0xff]
    %v1182 = vld [vmem:[#allocation2 + $0xc0] sm:$0xff]
    %v1183 = vld [vmem:[#allocation2 + $0xc8] sm:$0xff]
    %v1184 = vld [vmem:[#allocation2 + $0xd0] sm:$0xff]
    %v1185 = vld [vmem:[#allocation2 + $0xd8] sm:$0xff]
    %v1186 = vld [vmem:[#allocation2 + $0xe0] sm:$0xff]
    %v1187 = vld [vmem:[#allocation2 + $0xe8] sm:$0xff]
    %v1188 = vld [vmem:[#allocation2 + $0xf0] sm:$0xff]
    %v1189 = vld [vmem:[#allocation2 + $0xf8] sm:$0xff]
    %v1190 = vld [vmem:[#allocation2 + $0x100] sm:$0xff]
    %v1191 = vld [vmem:[#allocation2 + $0x108] sm:$0xff]
    %v1192 = vld [vmem:[#allocation2 + $0x110] sm:$0xff]
    %v1193 = vld [vmem:[#allocation2 + $0x118] sm:$0xff]
    %v1194 = vld [vmem:[#allocation2 + $0x120] sm:$0xff]
    %v1195 = vld [vmem:[#allocation2 + $0x128] sm:$0xff]
    %v1196 = vld [vmem:[#allocation2 + $0x130] sm:$0xff]
    %v1197 = vld [vmem:[#allocation2 + $0x138] sm:$0xff]
    %v1198 = vld [vmem:[#allocation2 + $0x140] sm:$0xff]
    %v1199 = vld [vmem:[#allocation2 + $0x148] sm:$0xff]
    %v1200 = vld [vmem:[#allocation2 + $0x150] sm:$0xff]
    %v1201 = vld [vmem:[#allocation2 + $0x158] sm:$0xff]
    %v1202 = vld [vmem:[#allocation2 + $0x160] sm:$0xff]
    %v1203 = vld [vmem:[#allocation2 + $0x168] sm:$0xff]
    %v1204 = vld [vmem:[#allocation2 + $0x170] sm:$0xff]
    %v1205 = vld [vmem:[#allocation2 + $0x178] sm:$0xff]
    %s1206 = scalar_lea.vmem [#allocation2], 384
    %v1207 = vld [vmem:[%s1206] ss:$8 sm:$0x3]
    %v1209 = vlaneseq
    %v1210 = vshrl.u32 %v1209, 7
    %v1211 = vsub.s32 0, %v1210
    %v1212 = vrot.slane %v1207, %v1211
    %v1213 = vlaneseq
    %v1214 = vshrl.u32 %v1213, 7
    %v1215 = vsub.s32 1, %v1214
    %v1216 = vrot.slane %v1207, %v1215
    %1219 = vmatprep.subr.mxu0 %v1159
    %1220 = vmatpush1.msra.mxu0 %v1158
    %1221 = vmatprep.subr.mxu0 %v1161
    %1222 = vmatpush1.msra.mxu0 %v1160
    %1223 = vmatprep.subr.mxu0 %v1163
    %1224 = vmatpush1.msra.mxu0 %v1162
    %1225 = vmatprep.subr.mxu0 %v1165
    %1226 = vmatpush1.msra.mxu0 %v1164
    %1227 = vmatprep.subr.mxu0 %v1167
    %1228 = vmatpush1.msra.mxu0 %v1166
    %1229 = vmatprep.subr.mxu0 %v1169
    %1230 = vmatpush1.msra.mxu0 %v1168
    %1231 = vmatprep.subr.mxu0 %v1171
    %1232 = vmatpush1.msra.mxu0 %v1170
    %1233 = vmatprep.subr.mxu0 %v1173
    %1234 = vmatpush1.msra.mxu0 %v1172
    %1235 = vmatprep.subr.mxu0 %v1175
    %1236 = vmatpush1.msra.mxu0 %v1174
    %1237 = vmatprep.subr.mxu0 %v1177
    %1238 = vmatpush1.msra.mxu0 %v1176
    %1239 = vmatprep.subr.mxu0 %v1179
    %1240 = vmatpush1.msra.mxu0 %v1178
    %1241 = vmatprep.subr.mxu0 %v1181
    %1242 = vmatpush1.msra.mxu0 %v1180
    %1243 = vmatprep.subr.mxu0 %v1183
    %1244 = vmatpush1.msra.mxu0 %v1182
    %1245 = vmatprep.subr.mxu0 %v1185
    %1246 = vmatpush1.msra.mxu0 %v1184
    %1247 = vmatprep.subr.mxu0 %v1187
    %1248 = vmatpush1.msra.mxu0 %v1186
    %1249 = vmatprep.subr.mxu0 %v1189
    %1250 = vmatpush1.msra.mxu0 %v1188
    %1251 = vmatprep.subr.mxu0 0.0
    %1252 = vmatpush1.msra.mxu0 0.0
    %1253 = vmatprep.subr.mxu0 0.0
    %1254 = vmatpush1.msra.mxu0 0.0
    %1255 = vmatprep.subr.mxu0 0.0
    %1256 = vmatpush1.msra.mxu0 0.0
    %1257 = vmatprep.subr.mxu0 0.0
    %1258 = vmatpush1.msra.mxu0 0.0
    %1259 = vmatprep.subr.mxu0 0.0
    %1260 = vmatpush1.msra.mxu0 0.0
    %1261 = vmatprep.subr.mxu0 0.0
    %1262 = vmatpush1.msra.mxu0 0.0
    %1263 = vmatprep.subr.mxu0 0.0
    %1264 = vmatpush1.msra.mxu0 0.0
    %1265 = vmatprep.subr.mxu0 0.0
    %1266 = vmatpush1.msra.mxu0 0.0
    %1267 = vmatprep.subr.mxu0 0.0
    %1268 = vmatpush1.msra.mxu0 0.0
    %1269 = vmatprep.subr.mxu0 0.0
    %1270 = vmatpush1.msra.mxu0 0.0
    %1271 = vmatprep.subr.mxu0 0.0
    %1272 = vmatpush1.msra.mxu0 0.0
    %1273 = vmatprep.subr.mxu0 0.0
    %1274 = vmatpush1.msra.mxu0 0.0
    %1275 = vmatprep.subr.mxu0 0.0
    %1276 = vmatpush1.msra.mxu0 0.0
    %1277 = vmatprep.subr.mxu0 0.0
    %1278 = vmatpush1.msra.mxu0 0.0
    %1279 = vmatprep.subr.mxu0 0.0
    %1280 = vmatpush1.msra.mxu0 0.0
    %1281 = vmatprep.subr.mxu0 0.0
    %1282 = vmatpush1.msra.mxu0 0.0
    %1283 = vmatprep.mubr.f32.mxu0 0.0
    %1284 = vmatmul.mubr.f32.gmra.mrb[0].mxu0 %v1157
    %v1285 = vpop.f32.mrb[0].mxu0
    %v1286 = vadd.f32 %v1212, %v1285
    %v1287 = vpop.f32.mrb[0].mxu0
    %v1288 = vadd.f32 %v1216, %v1287
    %1289 = vdwg.mxu0
    %1290 = vmatprep.subr.mxu0 %v1191
    %1291 = vmatpush1.msra.mxu0 %v1190
    %1292 = vmatprep.subr.mxu0 %v1193
    %1293 = vmatpush1.msra.mxu0 %v1192
    %1294 = vmatprep.subr.mxu0 %v1195
    %1295 = vmatpush1.msra.mxu0 %v1194
    %1296 = vmatprep.subr.mxu0 %v1197
    %1297 = vmatpush1.msra.mxu0 %v1196
    %1298 = vmatprep.subr.mxu0 %v1199
    %1299 = vmatpush1.msra.mxu0 %v1198
    %1300 = vmatprep.subr.mxu0 %v1201
    %1301 = vmatpush1.msra.mxu0 %v1200
    %1302 = vmatprep.subr.mxu0 %v1203
    %1303 = vmatpush1.msra.mxu0 %v1202
    %1304 = vmatprep.subr.mxu0 %v1205
    %1305 = vmatpush1.msra.mxu0 %v1204
    %1306 = vmatprep.subr.mxu0 0.0
    %1307 = vmatpush1.msra.mxu0 0.0
    %1308 = vmatprep.subr.mxu0 0.0
    %1309 = vmatpush1.msra.mxu0 0.0
    %1310 = vmatprep.subr.mxu0 0.0
    %1311 = vmatpush1.msra.mxu0 0.0
    %1312 = vmatprep.subr.mxu0 0.0
    %1313 = vmatpush1.msra.mxu0 0.0
    %1314 = vmatprep.subr.mxu0 0.0
    %1315 = vmatpush1.msra.mxu0 0.0
    %1316 = vmatprep.subr.mxu0 0.0
    %1317 = vmatpush1.msra.mxu0 0.0
    %1318 = vmatprep.subr.mxu0 0.0
    %1319 = vmatpush1.msra.mxu0 0.0
    %1320 = vmatprep.subr.mxu0 0.0
    %1321 = vmatpush1.msra.mxu0 0.0
    %1322 = vmatprep.subr.mxu0 0.0
    %1323 = vmatpush1.msra.mxu0 0.0
    %1324 = vmatprep.subr.mxu0 0.0
    %1325 = vmatpush1.msra.mxu0 0.0
    %1326 = vmatprep.subr.mxu0 0.0
    %1327 = vmatpush1.msra.mxu0 0.0
    %1328 = vmatprep.subr.mxu0 0.0
    %1329 = vmatpush1.msra.mxu0 0.0
    %1330 = vmatprep.subr.mxu0 0.0
    %1331 = vmatpush1.msra.mxu0 0.0
    %1332 = vmatprep.subr.mxu0 0.0
    %1333 = vmatpush1.msra.mxu0 0.0
    %1334 = vmatprep.subr.mxu0 0.0
    %1335 = vmatpush1.msra.mxu0 0.0
    %1336 = vmatprep.subr.mxu0 0.0
    %1337 = vmatpush1.msra.mxu0 0.0
    %1338 = vmatprep.subr.mxu0 0.0
    %1339 = vmatpush1.msra.mxu0 0.0
    %1340 = vmatprep.subr.mxu0 0.0
    %1341 = vmatpush1.msra.mxu0 0.0
    %1342 = vmatprep.subr.mxu0 0.0
    %1343 = vmatpush1.msra.mxu0 0.0
    %1344 = vmatprep.subr.mxu0 0.0
    %1345 = vmatpush1.msra.mxu0 0.0
    %1346 = vmatprep.subr.mxu0 0.0
    %1347 = vmatpush1.msra.mxu0 0.0
    %1348 = vmatprep.subr.mxu0 0.0
    %1349 = vmatpush1.msra.mxu0 0.0
    %1350 = vmatprep.subr.mxu0 0.0
    %1351 = vmatpush1.msra.mxu0 0.0
    %1352 = vmatprep.subr.mxu0 0.0
    %1353 = vmatpush1.msra.mxu0 0.0
    %1354 = vmatprep.mubr.f32.mxu0 0.0
    %1355 = vmatmul.mubr.f32.gmra.mrb[0].mxu0 %v182
    %v1356 = vpop.f32.mrb[0].mxu0
    %v1357 = vadd.f32 0.0, %v1356
    %v1358 = vpop.f32.mrb[0].mxu0
    %v1359 = vadd.f32 0.0, %v1358
    %1360 = vdwg.mxu0
    %v1361 = vadd.f32 %v1286, %v1357
    %v1362 = vadd.f32 %v1288, %v1359
    %v1363 = vxor.u32 %v1361, 2147483648
    %v1364 = vxor.u32 %v1362, 2147483648
    %v1365 = vmul.f32 %v1363, 1.442695
    %v1366 = vpow.pop %v1365
    %v1367 = vmul.f32 %v1364, 1.442695
    %v1368 = vpow.pop %v1367
    %v1369 = vadd.f32 %v1366, 1.0
    %v1370 = vadd.f32 %v1368, 1.0
    %v1371 = vrcp.pop %v1369
    %v1372 = vmul.f32 1.0, %v1371
    %v1373 = vrcp.pop %v1370
    %v1374 = vmul.f32 1.0, %v1373
    %v1375 = vtanh.pop %v1362
    %v1376 = vmul.f32 %v1372, 0.0
    %v1377 = vmul.f32 %v1372, %v1375
    %1379 = vrot.lane.b32.xlu0 %v1377, 64
    %v1380 = vpop.permute.xlu0 %1379
    %v1382 = vadd.f32 %v1376, %v1380
    %v1383 = vtanh.pop %v1382
    %v1384 = vmul.f32 %v1374, %v1383
    %1386 = vrot.lane.b32.xlu0 %v1384, 64
    %v1387 = vpop.permute.xlu0 %1386
    %v1388 = vsel %vm180, %v1387, 0
    %1390 = vmatprep.subr.mxu0 %v1191
    %1391 = vmatpush1.msra.mxu0 %v1190
    %1392 = vmatprep.subr.mxu0 %v1193
    %1393 = vmatpush1.msra.mxu0 %v1192
    %1394 = vmatprep.subr.mxu0 %v1195
    %1395 = vmatpush1.msra.mxu0 %v1194
    %1396 = vmatprep.subr.mxu0 %v1197
    %1397 = vmatpush1.msra.mxu0 %v1196
    %1398 = vmatprep.subr.mxu0 %v1199
    %1399 = vmatpush1.msra.mxu0 %v1198
    %1400 = vmatprep.subr.mxu0 %v1201
    %1401 = vmatpush1.msra.mxu0 %v1200
    %1402 = vmatprep.subr.mxu0 %v1203
    %1403 = vmatpush1.msra.mxu0 %v1202
    %1404 = vmatprep.subr.mxu0 %v1205
    %1405 = vmatpush1.msra.mxu0 %v1204
    %1406 = vmatprep.subr.mxu0 0.0
    %1407 = vmatpush1.msra.mxu0 0.0
    %1408 = vmatprep.subr.mxu0 0.0
    %1409 = vmatpush1.msra.mxu0 0.0
    %1410 = vmatprep.subr.mxu0 0.0
    %1411 = vmatpush1.msra.mxu0 0.0
    %1412 = vmatprep.subr.mxu0 0.0
    %1413 = vmatpush1.msra.mxu0 0.0
    %1414 = vmatprep.subr.mxu0 0.0
    %1415 = vmatpush1.msra.mxu0 0.0
    %1416 = vmatprep.subr.mxu0 0.0
    %1417 = vmatpush1.msra.mxu0 0.0
    %1418 = vmatprep.subr.mxu0 0.0
    %1419 = vmatpush1.msra.mxu0 0.0
    %1420 = vmatprep.subr.mxu0 0.0
    %1421 = vmatpush1.msra.mxu0 0.0
    %1422 = vmatprep.subr.mxu0 0.0
    %1423 = vmatpush1.msra.mxu0 0.0
    %1424 = vmatprep.subr.mxu0 0.0
    %1425 = vmatpush1.msra.mxu0 0.0
    %1426 = vmatprep.subr.mxu0 0.0
    %1427 = vmatpush1.msra.mxu0 0.0
    %1428 = vmatprep.subr.mxu0 0.0
    %1429 = vmatpush1.msra.mxu0 0.0
    %1430 = vmatprep.subr.mxu0 0.0
    %1431 = vmatpush1.msra.mxu0 0.0
    %1432 = vmatprep.subr.mxu0 0.0
    %1433 = vmatpush1.msra.mxu0 0.0
    %1434 = vmatprep.subr.mxu0 0.0
    %1435 = vmatpush1.msra.mxu0 0.0
    %1436 = vmatprep.subr.mxu0 0.0
    %1437 = vmatpush1.msra.mxu0 0.0
    %1438 = vmatprep.subr.mxu0 0.0
    %1439 = vmatpush1.msra.mxu0 0.0
    %1440 = vmatprep.subr.mxu0 0.0
    %1441 = vmatpush1.msra.mxu0 0.0
    %1442 = vmatprep.subr.mxu0 0.0
    %1443 = vmatpush1.msra.mxu0 0.0
    %1444 = vmatprep.subr.mxu0 0.0
    %1445 = vmatpush1.msra.mxu0 0.0
    %1446 = vmatprep.subr.mxu0 0.0
    %1447 = vmatpush1.msra.mxu0 0.0
    %1448 = vmatprep.subr.mxu0 0.0
    %1449 = vmatpush1.msra.mxu0 0.0
    %1450 = vmatprep.subr.mxu0 0.0
    %1451 = vmatpush1.msra.mxu0 0.0
    %1452 = vmatprep.subr.mxu0 0.0
    %1453 = vmatpush1.msra.mxu0 0.0
    %1454 = vmatprep.mubr.f32.mxu0 0.0
    %1455 = vmatmul.mubr.f32.gmra.mrb[0].mxu0 %v1388
    %v1456 = vpop.f32.mrb[0].mxu0
    %v1457 = vadd.f32 0.0, %v1456
    %v1458 = vpop.f32.mrb[0].mxu0
    %v1459 = vadd.f32 0.0, %v1458
    %1460 = vdwg.mxu0
    %v1463 = vrot.slane %v1457, 6
    %v1464 = vrot.slane %v1459, 6
    %v1467 = vadd.f32 %v1286, %v1463
    %v1468 = vadd.f32 %v1288, %v1464
    %v1469 = vxor.u32 %v1467, 2147483648
    %v1470 = vxor.u32 %v1468, 2147483648
    %v1471 = vmul.f32 %v1469, 1.442695
    %v1472 = vpow.pop %v1471
    %v1473 = vmul.f32 %v1470, 1.442695
    %v1474 = vpow.pop %v1473
    %v1475 = vadd.f32 %v1472, 1.0
    %v1476 = vadd.f32 %v1474, 1.0
    %v1477 = vrcp.pop %v1475
    %v1478 = vmul.f32 1.0, %v1477
    %v1479 = vrcp.pop %v1476
    %v1480 = vmul.f32 1.0, %v1479
    %v1481 = vtanh.pop %v1468
    %v1483 = vrot.slane %v1382, 6
    %v1485 = vmul.f32 %v1478, %v1483
    %v1486 = vmul.f32 %v1478, %v1481
    %1488 = vrot.lane.b32.xlu0 %v1486, 64
    %v1489 = vpop.permute.xlu0 %1488
    %v1491 = vadd.f32 %v1485, %v1489
    %v1492 = vtanh.pop %v1491
    %v1493 = vmul.f32 %v1480, %v1492
    %v1495 = vrot.slane %v1493, 2
    %1496 = vrot.lane.b32.xlu0 %v1495, 64
    %v1497 = vpop.permute.xlu0 %1496
    %v1498 = vsel %vm180, %v1497, 0
    %1500 = vmatprep.subr.mxu0 %v1191
    %1501 = vmatpush1.msra.mxu0 %v1190
    %1502 = vmatprep.subr.mxu0 %v1193
    %1503 = vmatpush1.msra.mxu0 %v1192
    %1504 = vmatprep.subr.mxu0 %v1195
    %1505 = vmatpush1.msra.mxu0 %v1194
    %1506 = vmatprep.subr.mxu0 %v1197
    %1507 = vmatpush1.msra.mxu0 %v1196
    %1508 = vmatprep.subr.mxu0 %v1199
    %1509 = vmatpush1.msra.mxu0 %v1198
    %1510 = vmatprep.subr.mxu0 %v1201
    %1511 = vmatpush1.msra.mxu0 %v1200
    %1512 = vmatprep.subr.mxu0 %v1203
    %1513 = vmatpush1.msra.mxu0 %v1202
    %1514 = vmatprep.subr.mxu0 %v1205
    %1515 = vmatpush1.msra.mxu0 %v1204
    %1516 = vmatprep.subr.mxu0 0.0
    %1517 = vmatpush1.msra.mxu0 0.0
    %1518 = vmatprep.subr.mxu0 0.0
    %1519 = vmatpush1.msra.mxu0 0.0
    %1520 = vmatprep.subr.mxu0 0.0
    %1521 = vmatpush1.msra.mxu0 0.0
    %1522 = vmatprep.subr.mxu0 0.0
    %1523 = vmatpush1.msra.mxu0 0.0
    %1524 = vmatprep.subr.mxu0 0.0
    %1525 = vmatpush1.msra.mxu0 0.0
    %1526 = vmatprep.subr.mxu0 0.0
    %1527 = vmatpush1.msra.mxu0 0.0
    %1528 = vmatprep.subr.mxu0 0.0
    %1529 = vmatpush1.msra.mxu0 0.0
    %1530 = vmatprep.subr.mxu0 0.0
    %1531 = vmatpush1.msra.mxu0 0.0
    %1532 = vmatprep.subr.mxu0 0.0
    %1533 = vmatpush1.msra.mxu0 0.0
    %1534 = vmatprep.subr.mxu0 0.0
    %1535 = vmatpush1.msra.mxu0 0.0
    %1536 = vmatprep.subr.mxu0 0.0
    %1537 = vmatpush1.msra.mxu0 0.0
    %1538 = vmatprep.subr.mxu0 0.0
    %1539 = vmatpush1.msra.mxu0 0.0
    %1540 = vmatprep.subr.mxu0 0.0
    %1541 = vmatpush1.msra.mxu0 0.0
    %1542 = vmatprep.subr.mxu0 0.0
    %1543 = vmatpush1.msra.mxu0 0.0
    %1544 = vmatprep.subr.mxu0 0.0
    %1545 = vmatpush1.msra.mxu0 0.0
    %1546 = vmatprep.subr.mxu0 0.0
    %1547 = vmatpush1.msra.mxu0 0.0
    %1548 = vmatprep.subr.mxu0 0.0
    %1549 = vmatpush1.msra.mxu0 0.0
    %1550 = vmatprep.subr.mxu0 0.0
    %1551 = vmatpush1.msra.mxu0 0.0
    %1552 = vmatprep.subr.mxu0 0.0
    %1553 = vmatpush1.msra.mxu0 0.0
    %1554 = vmatprep.subr.mxu0 0.0
    %1555 = vmatpush1.msra.mxu0 0.0
    %1556 = vmatprep.subr.mxu0 0.0
    %1557 = vmatpush1.msra.mxu0 0.0
    %1558 = vmatprep.subr.mxu0 0.0
    %1559 = vmatpush1.msra.mxu0 0.0
    %1560 = vmatprep.subr.mxu0 0.0
    %1561 = vmatpush1.msra.mxu0 0.0
    %1562 = vmatprep.subr.mxu0 0.0
    %1563 = vmatpush1.msra.mxu0 0.0
    %1564 = vmatprep.mubr.f32.mxu0 0.0
    %1565 = vmatmul.mubr.f32.gmra.mrb[0].mxu0 %v1498
    %v1566 = vpop.f32.mrb[0].mxu0
    %v1567 = vadd.f32 0.0, %v1566
    %v1568 = vpop.f32.mrb[0].mxu0
    %v1569 = vadd.f32 0.0, %v1568
    %1570 = vdwg.mxu0
    %v1573 = vrot.slane %v1567, 4
    %v1574 = vrot.slane %v1569, 4
    %v1577 = vadd.f32 %v1286, %v1573
    %v1578 = vadd.f32 %v1288, %v1574
    %v1579 = vxor.u32 %v1577, 2147483648
    %v1580 = vxor.u32 %v1578, 2147483648
    %v1581 = vmul.f32 %v1579, 1.442695
    %v1582 = vpow.pop %v1581
    %v1583 = vmul.f32 %v1580, 1.442695
    %v1584 = vpow.pop %v1583
    %v1585 = vadd.f32 %v1582, 1.0
    %v1586 = vadd.f32 %v1584, 1.0
    %v1587 = vrcp.pop %v1585
    %v1588 = vmul.f32 1.0, %v1587
    %v1589 = vrcp.pop %v1586
    %v1590 = vmul.f32 1.0, %v1589
    %v1591 = vtanh.pop %v1578
    %v1593 = vrot.slane %v1491, 6
    %v1595 = vmul.f32 %v1588, %v1593
    %v1596 = vmul.f32 %v1588, %v1591
    %1598 = vrot.lane.b32.xlu0 %v1596, 64
    %v1599 = vpop.permute.xlu0 %1598
    %v1601 = vadd.f32 %v1595, %v1599
    %v1602 = vtanh.pop %v1601
    %v1603 = vmul.f32 %v1590, %v1602
    %v1605 = vrot.slane %v1603, 4
    %1606 = vrot.lane.b32.xlu0 %v1605, 64
    %v1607 = vpop.permute.xlu0 %1606
    %v1608 = vsel %vm180, %v1607, 0
    %1610 = vmatprep.subr.mxu0 %v1191
    %1611 = vmatpush1.msra.mxu0 %v1190
    %1612 = vmatprep.subr.mxu0 %v1193
    %1613 = vmatpush1.msra.mxu0 %v1192
    %1614 = vmatprep.subr.mxu0 %v1195
    %1615 = vmatpush1.msra.mxu0 %v1194
    %1616 = vmatprep.subr.mxu0 %v1197
    %1617 = vmatpush1.msra.mxu0 %v1196
    %1618 = vmatprep.subr.mxu0 %v1199
    %1619 = vmatpush1.msra.mxu0 %v1198
    %1620 = vmatprep.subr.mxu0 %v1201
    %1621 = vmatpush1.msra.mxu0 %v1200
    %1622 = vmatprep.subr.mxu0 %v1203
    %1623 = vmatpush1.msra.mxu0 %v1202
    %1624 = vmatprep.subr.mxu0 %v1205
    %1625 = vmatpush1.msra.mxu0 %v1204
    %1626 = vmatprep.subr.mxu0 0.0
    %1627 = vmatpush1.msra.mxu0 0.0
    %1628 = vmatprep.subr.mxu0 0.0
    %1629 = vmatpush1.msra.mxu0 0.0
    %1630 = vmatprep.subr.mxu0 0.0
    %1631 = vmatpush1.msra.mxu0 0.0
    %1632 = vmatprep.subr.mxu0 0.0
    %1633 = vmatpush1.msra.mxu0 0.0
    %1634 = vmatprep.subr.mxu0 0.0
    %1635 = vmatpush1.msra.mxu0 0.0
    %1636 = vmatprep.subr.mxu0 0.0
    %1637 = vmatpush1.msra.mxu0 0.0
    %1638 = vmatprep.subr.mxu0 0.0
    %1639 = vmatpush1.msra.mxu0 0.0
    %1640 = vmatprep.subr.mxu0 0.0
    %1641 = vmatpush1.msra.mxu0 0.0
    %1642 = vmatprep.subr.mxu0 0.0
    %1643 = vmatpush1.msra.mxu0 0.0
    %1644 = vmatprep.subr.mxu0 0.0
    %1645 = vmatpush1.msra.mxu0 0.0
    %1646 = vmatprep.subr.mxu0 0.0
    %1647 = vmatpush1.msra.mxu0 0.0
    %1648 = vmatprep.subr.mxu0 0.0
    %1649 = vmatpush1.msra.mxu0 0.0
    %1650 = vmatprep.subr.mxu0 0.0
    %1651 = vmatpush1.msra.mxu0 0.0
    %1652 = vmatprep.subr.mxu0 0.0
    %1653 = vmatpush1.msra.mxu0 0.0
    %1654 = vmatprep.subr.mxu0 0.0
    %1655 = vmatpush1.msra.mxu0 0.0
    %1656 = vmatprep.subr.mxu0 0.0
    %1657 = vmatpush1.msra.mxu0 0.0
    %1658 = vmatprep.subr.mxu0 0.0
    %1659 = vmatpush1.msra.mxu0 0.0
    %1660 = vmatprep.subr.mxu0 0.0
    %1661 = vmatpush1.msra.mxu0 0.0
    %1662 = vmatprep.subr.mxu0 0.0
    %1663 = vmatpush1.msra.mxu0 0.0
    %1664 = vmatprep.subr.mxu0 0.0
    %1665 = vmatpush1.msra.mxu0 0.0
    %1666 = vmatprep.subr.mxu0 0.0
    %1667 = vmatpush1.msra.mxu0 0.0
    %1668 = vmatprep.subr.mxu0 0.0
    %1669 = vmatpush1.msra.mxu0 0.0
    %1670 = vmatprep.subr.mxu0 0.0
    %1671 = vmatpush1.msra.mxu0 0.0
    %1672 = vmatprep.subr.mxu0 0.0
    %1673 = vmatpush1.msra.mxu0 0.0
    %1674 = vmatprep.mubr.f32.mxu0 0.0
    %1675 = vmatmul.mubr.f32.gmra.mrb[0].mxu0 %v1608
    %v1676 = vpop.f32.mrb[0].mxu0
    %v1677 = vadd.f32 0.0, %v1676
    %v1678 = vpop.f32.mrb[0].mxu0
    %v1679 = vadd.f32 0.0, %v1678
    %1680 = vdwg.mxu0
    %v1683 = vrot.slane %v1677, 2
    %v1684 = vrot.slane %v1679, 2
    %v1687 = vadd.f32 %v1286, %v1683
    %v1688 = vadd.f32 %v1288, %v1684
    %v1689 = vxor.u32 %v1687, 2147483648
    %v1690 = vxor.u32 %v1688, 2147483648
    %v1691 = vmul.f32 %v1689, 1.442695
    %v1692 = vpow.pop %v1691
    %v1693 = vmul.f32 %v1690, 1.442695
    %v1694 = vpow.pop %v1693
    %v1695 = vadd.f32 %v1692, 1.0
    %v1696 = vadd.f32 %v1694, 1.0
    %v1697 = vrcp.pop %v1695
    %v1698 = vmul.f32 1.0, %v1697
    %v1699 = vrcp.pop %v1696
    %v1700 = vmul.f32 1.0, %v1699
    %v1701 = vtanh.pop %v1688
    %v1703 = vrot.slane %v1601, 6
    %v1705 = vmul.f32 %v1698, %v1703
    %v1706 = vmul.f32 %v1698, %v1701
    %1708 = vrot.lane.b32.xlu0 %v1706, 64
    %v1709 = vpop.permute.xlu0 %1708
    %v1711 = vadd.f32 %v1705, %v1709
    %v1712 = vtanh.pop %v1711
    %v1713 = vmul.f32 %v1700, %v1712
    %v1716 = vrot.slane %v1713, 6
    %1717 = vrot.lane.b32.xlu0 %v1716, 64
    %v1718 = vpop.permute.xlu0 %1717
    %v1720 = vsel %vm96, %v1387, %v1718
    %1721 = vrot.lane.b32.xlu0 %v1493, 64
    %v1722 = vpop.permute.xlu0 %1721
    %v1724 = vrot.slane %v1603, 2
    %1725 = vrot.lane.b32.xlu0 %v1724, 64
    %v1726 = vpop.permute.xlu0 %1725
    %v1728 = vsel %vm96, %v1722, %v1726
    %1729 = vrot.lane.b32.xlu0 %v1603, 64
    %v1730 = vpop.permute.xlu0 %1729
    %v1732 = vrot.slane %v1493, 6
    %1733 = vrot.lane.b32.xlu0 %v1732, 64
    %v1734 = vpop.permute.xlu0 %1733
    %v1736 = vsel %vm96, %v1730, %v1734
    %1737 = vrot.lane.b32.xlu0 %v1713, 64
    %v1738 = vpop.permute.xlu0 %1737
    %v1740 = vrot.slane %v1384, 2
    %1741 = vrot.lane.b32.xlu0 %v1740, 64
    %v1742 = vpop.permute.xlu0 %1741
    %v1744 = vsel %vm96, %v1738, %v1742
    %v1746 = vrot.slane %v1728, 2
    %v1748 = vmax.f32 %v1720, %v1746
    %v1750 = vrot.slane %v1744, 2
    %v1752 = vmax.f32 %v1736, %v1750
    %s1753 = sshll.u32 %s1116, 4
    %1754 = dma.done %s45, %s1753
    %v1756 = vrot.slane %v1752, 4
    %1757 = vrot.lane.b32.xlu0 %v1756, 64
    %v1758 = vpop.permute.xlu0 %1757
    %v1760 = vsel %vm180, %v1748, %v1758
    %v1762 = vrot.slane %v1748, 4
    %1763 = vrot.lane.b32.xlu0 %v1762, 64
    %v1764 = vpop.permute.xlu0 %1763
    %v1766 = vsel %vm180, %v1752, %v1764
    %v1768 = vrot.slane %v1766, 2
    %v1770 = vsel %vm1152, %v1760, %v1768
    %v1771 = vld [vmem:[#allocation3] sm:$0xff]
    %v1772 = vld [vmem:[#allocation3 + $0x8] sm:$0xff]
    %v1773 = vld [vmem:[#allocation3 + $0x10] sm:$0xff]
    %v1774 = vld [vmem:[#allocation3 + $0x18] sm:$0xff]
    %v1775 = vld [vmem:[#allocation3 + $0x20] sm:$0xff]
    %v1776 = vld [vmem:[#allocation3 + $0x28] sm:$0xff]
    %v1777 = vld [vmem:[#allocation3 + $0x30] sm:$0xff]
    %v1778 = vld [vmem:[#allocation3 + $0x38] sm:$0xff]
    %v1779 = vld [vmem:[#allocation3 + $0x40] sm:$0xff]
    %v1780 = vld [vmem:[#allocation3 + $0x48] sm:$0xff]
    %v1781 = vld [vmem:[#allocation3 + $0x50] sm:$0xff]
    %v1782 = vld [vmem:[#allocation3 + $0x58] sm:$0xff]
    %v1783 = vld [vmem:[#allocation3 + $0x60] sm:$0xff]
    %v1784 = vld [vmem:[#allocation3 + $0x68] sm:$0xff]
    %v1785 = vld [vmem:[#allocation3 + $0x70] sm:$0xff]
    %v1786 = vld [vmem:[#allocation3 + $0x78] sm:$0xff]
    %v1787 = vld [vmem:[#allocation3 + $0x80] sm:$0xff]
    %v1788 = vld [vmem:[#allocation3 + $0x88] sm:$0xff]
    %v1789 = vld [vmem:[#allocation3 + $0x90] sm:$0xff]
    %v1790 = vld [vmem:[#allocation3 + $0x98] sm:$0xff]
    %v1791 = vld [vmem:[#allocation3 + $0xa0] sm:$0xff]
    %v1792 = vld [vmem:[#allocation3 + $0xa8] sm:$0xff]
    %v1793 = vld [vmem:[#allocation3 + $0xb0] sm:$0xff]
    %v1794 = vld [vmem:[#allocation3 + $0xb8] sm:$0xff]
    %v1795 = vld [vmem:[#allocation3 + $0xc0] sm:$0xff]
    %v1796 = vld [vmem:[#allocation3 + $0xc8] sm:$0xff]
    %v1797 = vld [vmem:[#allocation3 + $0xd0] sm:$0xff]
    %v1798 = vld [vmem:[#allocation3 + $0xd8] sm:$0xff]
    %v1799 = vld [vmem:[#allocation3 + $0xe0] sm:$0xff]
    %v1800 = vld [vmem:[#allocation3 + $0xe8] sm:$0xff]
    %v1801 = vld [vmem:[#allocation3 + $0xf0] sm:$0xff]
    %v1802 = vld [vmem:[#allocation3 + $0xf8] sm:$0xff]
    %v1803 = vld [vmem:[#allocation3 + $0x100] sm:$0xff]
    %v1804 = vld [vmem:[#allocation3 + $0x108] sm:$0xff]
    %v1805 = vld [vmem:[#allocation3 + $0x110] sm:$0xff]
    %v1806 = vld [vmem:[#allocation3 + $0x118] sm:$0xff]
    %v1807 = vld [vmem:[#allocation3 + $0x120] sm:$0xff]
    %v1808 = vld [vmem:[#allocation3 + $0x128] sm:$0xff]
    %v1809 = vld [vmem:[#allocation3 + $0x130] sm:$0xff]
    %v1810 = vld [vmem:[#allocation3 + $0x138] sm:$0xff]
    %v1811 = vld [vmem:[#allocation3 + $0x140] sm:$0xff]
    %v1812 = vld [vmem:[#allocation3 + $0x148] sm:$0xff]
    %v1813 = vld [vmem:[#allocation3 + $0x150] sm:$0xff]
    %v1814 = vld [vmem:[#allocation3 + $0x158] sm:$0xff]
    %v1815 = vld [vmem:[#allocation3 + $0x160] sm:$0xff]
    %v1816 = vld [vmem:[#allocation3 + $0x168] sm:$0xff]
    %v1817 = vld [vmem:[#allocation3 + $0x170] sm:$0xff]
    %v1818 = vld [vmem:[#allocation3 + $0x178] sm:$0xff]
    %s1819 = scalar_lea.vmem [#allocation3], 384
    %v1820 = vld [vmem:[%s1819] ss:$8 sm:$0x3]
    %v1822 = vlaneseq
    %v1823 = vshrl.u32 %v1822, 7
    %v1824 = vsub.s32 0, %v1823
    %v1825 = vrot.slane %v1820, %v1824
    %v1826 = vlaneseq
    %v1827 = vshrl.u32 %v1826, 7
    %v1828 = vsub.s32 1, %v1827
    %v1829 = vrot.slane %v1820, %v1828
    %1832 = vmatprep.subr.mxu0 %v1772
    %1833 = vmatpush1.msra.mxu0 %v1771
    %1834 = vmatprep.subr.mxu0 %v1774
    %1835 = vmatpush1.msra.mxu0 %v1773
    %1836 = vmatprep.subr.mxu0 %v1776
    %1837 = vmatpush1.msra.mxu0 %v1775
    %1838 = vmatprep.subr.mxu0 %v1778
    %1839 = vmatpush1.msra.mxu0 %v1777
    %1840 = vmatprep.subr.mxu0 %v1780
    %1841 = vmatpush1.msra.mxu0 %v1779
    %1842 = vmatprep.subr.mxu0 %v1782
    %1843 = vmatpush1.msra.mxu0 %v1781
    %1844 = vmatprep.subr.mxu0 %v1784
    %1845 = vmatpush1.msra.mxu0 %v1783
    %1846 = vmatprep.subr.mxu0 %v1786
    %1847 = vmatpush1.msra.mxu0 %v1785
    %1848 = vmatprep.subr.mxu0 %v1788
    %1849 = vmatpush1.msra.mxu0 %v1787
    %1850 = vmatprep.subr.mxu0 %v1790
    %1851 = vmatpush1.msra.mxu0 %v1789
    %1852 = vmatprep.subr.mxu0 %v1792
    %1853 = vmatpush1.msra.mxu0 %v1791
    %1854 = vmatprep.subr.mxu0 %v1794
    %1855 = vmatpush1.msra.mxu0 %v1793
    %1856 = vmatprep.subr.mxu0 %v1796
    %1857 = vmatpush1.msra.mxu0 %v1795
    %1858 = vmatprep.subr.mxu0 %v1798
    %1859 = vmatpush1.msra.mxu0 %v1797
    %1860 = vmatprep.subr.mxu0 %v1800
    %1861 = vmatpush1.msra.mxu0 %v1799
    %1862 = vmatprep.subr.mxu0 %v1802
    %1863 = vmatpush1.msra.mxu0 %v1801
    %1864 = vmatprep.subr.mxu0 0.0
    %1865 = vmatpush1.msra.mxu0 0.0
    %1866 = vmatprep.subr.mxu0 0.0
    %1867 = vmatpush1.msra.mxu0 0.0
    %1868 = vmatprep.subr.mxu0 0.0
    %1869 = vmatpush1.msra.mxu0 0.0
    %1870 = vmatprep.subr.mxu0 0.0
    %1871 = vmatpush1.msra.mxu0 0.0
    %1872 = vmatprep.subr.mxu0 0.0
    %1873 = vmatpush1.msra.mxu0 0.0
    %1874 = vmatprep.subr.mxu0 0.0
    %1875 = vmatpush1.msra.mxu0 0.0
    %1876 = vmatprep.subr.mxu0 0.0
    %1877 = vmatpush1.msra.mxu0 0.0
    %1878 = vmatprep.subr.mxu0 0.0
    %1879 = vmatpush1.msra.mxu0 0.0
    %1880 = vmatprep.subr.mxu0 0.0
    %1881 = vmatpush1.msra.mxu0 0.0
    %1882 = vmatprep.subr.mxu0 0.0
    %1883 = vmatpush1.msra.mxu0 0.0
    %1884 = vmatprep.subr.mxu0 0.0
    %1885 = vmatpush1.msra.mxu0 0.0
    %1886 = vmatprep.subr.mxu0 0.0
    %1887 = vmatpush1.msra.mxu0 0.0
    %1888 = vmatprep.subr.mxu0 0.0
    %1889 = vmatpush1.msra.mxu0 0.0
    %1890 = vmatprep.subr.mxu0 0.0
    %1891 = vmatpush1.msra.mxu0 0.0
    %1892 = vmatprep.subr.mxu0 0.0
    %1893 = vmatpush1.msra.mxu0 0.0
    %1894 = vmatprep.subr.mxu0 0.0
    %1895 = vmatpush1.msra.mxu0 0.0
    %1896 = vmatprep.mubr.f32.mxu0 0.0
    %1897 = vmatmul.mubr.f32.gmra.mrb[0].mxu0 %v1770
    %v1898 = vpop.f32.mrb[0].mxu0
    %v1899 = vadd.f32 %v1825, %v1898
    %v1900 = vpop.f32.mrb[0].mxu0
    %v1901 = vadd.f32 %v1829, %v1900
    %1902 = vdwg.mxu0
    %1903 = vmatprep.subr.mxu0 %v1804
    %1904 = vmatpush1.msra.mxu0 %v1803
    %1905 = vmatprep.subr.mxu0 %v1806
    %1906 = vmatpush1.msra.mxu0 %v1805
    %1907 = vmatprep.subr.mxu0 %v1808
    %1908 = vmatpush1.msra.mxu0 %v1807
    %1909 = vmatprep.subr.mxu0 %v1810
    %1910 = vmatpush1.msra.mxu0 %v1809
    %1911 = vmatprep.subr.mxu0 %v1812
    %1912 = vmatpush1.msra.mxu0 %v1811
    %1913 = vmatprep.subr.mxu0 %v1814
    %1914 = vmatpush1.msra.mxu0 %v1813
    %1915 = vmatprep.subr.mxu0 %v1816
    %1916 = vmatpush1.msra.mxu0 %v1815
    %1917 = vmatprep.subr.mxu0 %v1818
    %1918 = vmatpush1.msra.mxu0 %v1817
    %1919 = vmatprep.subr.mxu0 0.0
    %1920 = vmatpush1.msra.mxu0 0.0
    %1921 = vmatprep.subr.mxu0 0.0
    %1922 = vmatpush1.msra.mxu0 0.0
    %1923 = vmatprep.subr.mxu0 0.0
    %1924 = vmatpush1.msra.mxu0 0.0
    %1925 = vmatprep.subr.mxu0 0.0
    %1926 = vmatpush1.msra.mxu0 0.0
    %1927 = vmatprep.subr.mxu0 0.0
    %1928 = vmatpush1.msra.mxu0 0.0
    %1929 = vmatprep.subr.mxu0 0.0
    %1930 = vmatpush1.msra.mxu0 0.0
    %1931 = vmatprep.subr.mxu0 0.0
    %1932 = vmatpush1.msra.mxu0 0.0
    %1933 = vmatprep.subr.mxu0 0.0
    %1934 = vmatpush1.msra.mxu0 0.0
    %1935 = vmatprep.subr.mxu0 0.0
    %1936 = vmatpush1.msra.mxu0 0.0
    %1937 = vmatprep.subr.mxu0 0.0
    %1938 = vmatpush1.msra.mxu0 0.0
    %1939 = vmatprep.subr.mxu0 0.0
    %1940 = vmatpush1.msra.mxu0 0.0
    %1941 = vmatprep.subr.mxu0 0.0
    %1942 = vmatpush1.msra.mxu0 0.0
    %1943 = vmatprep.subr.mxu0 0.0
    %1944 = vmatpush1.msra.mxu0 0.0
    %1945 = vmatprep.subr.mxu0 0.0
    %1946 = vmatpush1.msra.mxu0 0.0
    %1947 = vmatprep.subr.mxu0 0.0
    %1948 = vmatpush1.msra.mxu0 0.0
    %1949 = vmatprep.subr.mxu0 0.0
    %1950 = vmatpush1.msra.mxu0 0.0
    %1951 = vmatprep.subr.mxu0 0.0
    %1952 = vmatpush1.msra.mxu0 0.0
    %1953 = vmatprep.subr.mxu0 0.0
    %1954 = vmatpush1.msra.mxu0 0.0
    %1955 = vmatprep.subr.mxu0 0.0
    %1956 = vmatpush1.msra.mxu0 0.0
    %1957 = vmatprep.subr.mxu0 0.0
    %1958 = vmatpush1.msra.mxu0 0.0
    %1959 = vmatprep.subr.mxu0 0.0
    %1960 = vmatpush1.msra.mxu0 0.0
    %1961 = vmatprep.subr.mxu0 0.0
    %1962 = vmatpush1.msra.mxu0 0.0
    %1963 = vmatprep.subr.mxu0 0.0
    %1964 = vmatpush1.msra.mxu0 0.0
    %1965 = vmatprep.subr.mxu0 0.0
    %1966 = vmatpush1.msra.mxu0 0.0
    %1967 = vmatprep.mubr.f32.mxu0 0.0
    %1968 = vmatmul.mubr.f32.gmra.mrb[0].mxu0 %v182
    %v1969 = vpop.f32.mrb[0].mxu0
    %v1970 = vadd.f32 0.0, %v1969
    %v1971 = vpop.f32.mrb[0].mxu0
    %v1972 = vadd.f32 0.0, %v1971
    %1973 = vdwg.mxu0
    %v1974 = vadd.f32 %v1899, %v1970
    %v1975 = vadd.f32 %v1901, %v1972
    %v1976 = vxor.u32 %v1974, 2147483648
    %v1977 = vxor.u32 %v1975, 2147483648
    %v1978 = vmul.f32 %v1976, 1.442695
    %v1979 = vpow.pop %v1978
    %v1980 = vmul.f32 %v1977, 1.442695
    %v1981 = vpow.pop %v1980
    %v1982 = vadd.f32 %v1979, 1.0
    %v1983 = vadd.f32 %v1981, 1.0
    %v1984 = vrcp.pop %v1982
    %v1985 = vmul.f32 1.0, %v1984
    %v1986 = vrcp.pop %v1983
    %v1987 = vmul.f32 1.0, %v1986
    %v1988 = vtanh.pop %v1975
    %v1989 = vmul.f32 %v1985, 0.0
    %v1990 = vmul.f32 %v1985, %v1988
    %1992 = vrot.lane.b32.xlu0 %v1990, 64
    %v1993 = vpop.permute.xlu0 %1992
    %v1995 = vadd.f32 %v1989, %v1993
    %v1996 = vtanh.pop %v1995
    %v1997 = vmul.f32 %v1987, %v1996
    %1999 = vrot.lane.b32.xlu0 %v1997, 64
    %v2000 = vpop.permute.xlu0 %1999
    %v2001 = vsel %vm180, %v2000, 0
    %2003 = vmatprep.subr.mxu0 %v1804
    %2004 = vmatpush1.msra.mxu0 %v1803
    %2005 = vmatprep.subr.mxu0 %v1806
    %2006 = vmatpush1.msra.mxu0 %v1805
    %2007 = vmatprep.subr.mxu0 %v1808
    %2008 = vmatpush1.msra.mxu0 %v1807
    %2009 = vmatprep.subr.mxu0 %v1810
    %2010 = vmatpush1.msra.mxu0 %v1809
    %2011 = vmatprep.subr.mxu0 %v1812
    %2012 = vmatpush1.msra.mxu0 %v1811
    %2013 = vmatprep.subr.mxu0 %v1814
    %2014 = vmatpush1.msra.mxu0 %v1813
    %2015 = vmatprep.subr.mxu0 %v1816
    %2016 = vmatpush1.msra.mxu0 %v1815
    %2017 = vmatprep.subr.mxu0 %v1818
    %2018 = vmatpush1.msra.mxu0 %v1817
    %2019 = vmatprep.subr.mxu0 0.0
    %2020 = vmatpush1.msra.mxu0 0.0
    %2021 = vmatprep.subr.mxu0 0.0
    %2022 = vmatpush1.msra.mxu0 0.0
    %2023 = vmatprep.subr.mxu0 0.0
    %2024 = vmatpush1.msra.mxu0 0.0
    %2025 = vmatprep.subr.mxu0 0.0
    %2026 = vmatpush1.msra.mxu0 0.0
    %2027 = vmatprep.subr.mxu0 0.0
    %2028 = vmatpush1.msra.mxu0 0.0
    %2029 = vmatprep.subr.mxu0 0.0
    %2030 = vmatpush1.msra.mxu0 0.0
    %2031 = vmatprep.subr.mxu0 0.0
    %2032 = vmatpush1.msra.mxu0 0.0
    %2033 = vmatprep.subr.mxu0 0.0
    %2034 = vmatpush1.msra.mxu0 0.0
    %2035 = vmatprep.subr.mxu0 0.0
    %2036 = vmatpush1.msra.mxu0 0.0
    %2037 = vmatprep.subr.mxu0 0.0
    %2038 = vmatpush1.msra.mxu0 0.0
    %2039 = vmatprep.subr.mxu0 0.0
    %2040 = vmatpush1.msra.mxu0 0.0
    %2041 = vmatprep.subr.mxu0 0.0
    %2042 = vmatpush1.msra.mxu0 0.0
    %2043 = vmatprep.subr.mxu0 0.0
    %2044 = vmatpush1.msra.mxu0 0.0
    %2045 = vmatprep.subr.mxu0 0.0
    %2046 = vmatpush1.msra.mxu0 0.0
    %2047 = vmatprep.subr.mxu0 0.0
    %2048 = vmatpush1.msra.mxu0 0.0
    %2049 = vmatprep.subr.mxu0 0.0
    %2050 = vmatpush1.msra.mxu0 0.0
    %2051 = vmatprep.subr.mxu0 0.0
    %2052 = vmatpush1.msra.mxu0 0.0
    %2053 = vmatprep.subr.mxu0 0.0
    %2054 = vmatpush1.msra.mxu0 0.0
    %2055 = vmatprep.subr.mxu0 0.0
    %2056 = vmatpush1.msra.mxu0 0.0
    %2057 = vmatprep.subr.mxu0 0.0
    %2058 = vmatpush1.msra.mxu0 0.0
    %2059 = vmatprep.subr.mxu0 0.0
    %2060 = vmatpush1.msra.mxu0 0.0
    %2061 = vmatprep.subr.mxu0 0.0
    %2062 = vmatpush1.msra.mxu0 0.0
    %2063 = vmatprep.subr.mxu0 0.0
    %2064 = vmatpush1.msra.mxu0 0.0
    %2065 = vmatprep.subr.mxu0 0.0
    %2066 = vmatpush1.msra.mxu0 0.0
    %2067 = vmatprep.mubr.f32.mxu0 0.0
    %2068 = vmatmul.mubr.f32.gmra.mrb[0].mxu0 %v2001
    %v2069 = vpop.f32.mrb[0].mxu0
    %v2070 = vadd.f32 0.0, %v2069
    %v2071 = vpop.f32.mrb[0].mxu0
    %v2072 = vadd.f32 0.0, %v2071
    %2073 = vdwg.mxu0
    %v2076 = vrot.slane %v2070, 6
    %v2077 = vrot.slane %v2072, 6
    %v2080 = vadd.f32 %v1899, %v2076
    %v2081 = vadd.f32 %v1901, %v2077
    %v2082 = vxor.u32 %v2080, 2147483648
    %v2083 = vxor.u32 %v2081, 2147483648
    %v2084 = vmul.f32 %v2082, 1.442695
    %v2085 = vpow.pop %v2084
    %v2086 = vmul.f32 %v2083, 1.442695
    %v2087 = vpow.pop %v2086
    %v2088 = vadd.f32 %v2085, 1.0
    %v2089 = vadd.f32 %v2087, 1.0
    %v2090 = vrcp.pop %v2088
    %v2091 = vmul.f32 1.0, %v2090
    %v2092 = vrcp.pop %v2089
    %v2093 = vmul.f32 1.0, %v2092
    %v2094 = vtanh.pop %v2081
    %v2096 = vrot.slane %v1995, 6
    %v2098 = vmul.f32 %v2091, %v2096
    %v2099 = vmul.f32 %v2091, %v2094
    %2101 = vrot.lane.b32.xlu0 %v2099, 64
    %v2102 = vpop.permute.xlu0 %2101
    %v2104 = vadd.f32 %v2098, %v2102
    %v2105 = vtanh.pop %v2104
    %v2106 = vmul.f32 %v2093, %v2105
    %2108 = vrot.lane.b32.xlu0 %v2106, 64
    %v2109 = vpop.permute.xlu0 %2108
    %v2111 = vrot.slane %v1997, 6
    %2112 = vrot.lane.b32.xlu0 %v2111, 64
    %v2113 = vpop.permute.xlu0 %2112
    %v2115 = vsel %vm96, %v2109, %v2113
    %v2116 = vld [vmem:[%s4] sm:$0xff]
    %v2117 = vld [vmem:[%s4 + $0x8] sm:$0xff]
    %v2118 = vld [vmem:[%s4 + $0x10] sm:$0xff]
    %v2119 = vld [vmem:[%s4 + $0x18] sm:$0xff]
    %v2120 = vld [vmem:[%s4 + $0x20] sm:$0xff]
    %v2121 = vld [vmem:[%s4 + $0x28] sm:$0xff]
    %v2122 = vld [vmem:[%s4 + $0x30] sm:$0xff]
    %v2123 = vld [vmem:[%s4 + $0x38] sm:$0xff]
    %v2124 = vld [vmem:[%s5] sm:$0x1]
    %v2126 = vlaneseq
    %v2127 = vshrl.u32 %v2126, 7
    %v2128 = vsub.s32 0, %v2127
    %v2129 = vrot.slane %v2124, %v2128
    %v2132 = vrot.slane %v2115, 2
    %v2133 = vsel %vm180, %v2132, 0
    %2135 = vmatprep.subr.mxu0 0.0
    %2136 = vmatpush1.msra.mxu0 %v2116
    %2137 = vmatprep.subr.mxu0 0.0
    %2138 = vmatpush1.msra.mxu0 %v2117
    %2139 = vmatprep.subr.mxu0 0.0
    %2140 = vmatpush1.msra.mxu0 %v2118
    %2141 = vmatprep.subr.mxu0 0.0
    %2142 = vmatpush1.msra.mxu0 %v2119
    %2143 = vmatprep.subr.mxu0 0.0
    %2144 = vmatpush1.msra.mxu0 %v2120
    %2145 = vmatprep.subr.mxu0 0.0
    %2146 = vmatpush1.msra.mxu0 %v2121
    %2147 = vmatprep.subr.mxu0 0.0
    %2148 = vmatpush1.msra.mxu0 %v2122
    %2149 = vmatprep.subr.mxu0 0.0
    %2150 = vmatpush1.msra.mxu0 %v2123
    %2151 = vmatprep.subr.mxu0 0.0
    %2152 = vmatpush1.msra.mxu0 0.0
    %2153 = vmatprep.subr.mxu0 0.0
    %2154 = vmatpush1.msra.mxu0 0.0
    %2155 = vmatprep.subr.mxu0 0.0
    %2156 = vmatpush1.msra.mxu0 0.0
    %2157 = vmatprep.subr.mxu0 0.0
    %2158 = vmatpush1.msra.mxu0 0.0
    %2159 = vmatprep.subr.mxu0 0.0
    %2160 = vmatpush1.msra.mxu0 0.0
    %2161 = vmatprep.subr.mxu0 0.0
    %2162 = vmatpush1.msra.mxu0 0.0
    %2163 = vmatprep.subr.mxu0 0.0
    %2164 = vmatpush1.msra.mxu0 0.0
    %2165 = vmatprep.subr.mxu0 0.0
    %2166 = vmatpush1.msra.mxu0 0.0
    %2167 = vmatprep.subr.mxu0 0.0
    %2168 = vmatpush1.msra.mxu0 0.0
    %2169 = vmatprep.subr.mxu0 0.0
    %2170 = vmatpush1.msra.mxu0 0.0
    %2171 = vmatprep.subr.mxu0 0.0
    %2172 = vmatpush1.msra.mxu0 0.0
    %2173 = vmatprep.subr.mxu0 0.0
    %2174 = vmatpush1.msra.mxu0 0.0
    %2175 = vmatprep.subr.mxu0 0.0
    %2176 = vmatpush1.msra.mxu0 0.0
    %2177 = vmatprep.subr.mxu0 0.0
    %2178 = vmatpush1.msra.mxu0 0.0
    %2179 = vmatprep.subr.mxu0 0.0
    %2180 = vmatpush1.msra.mxu0 0.0
    %2181 = vmatprep.subr.mxu0 0.0
    %2182 = vmatpush1.msra.mxu0 0.0
    %2183 = vmatprep.subr.mxu0 0.0
    %2184 = vmatpush1.msra.mxu0 0.0
    %2185 = vmatprep.subr.mxu0 0.0
    %2186 = vmatpush1.msra.mxu0 0.0
    %2187 = vmatprep.subr.mxu0 0.0
    %2188 = vmatpush1.msra.mxu0 0.0
    %2189 = vmatprep.subr.mxu0 0.0
    %2190 = vmatpush1.msra.mxu0 0.0
    %2191 = vmatprep.subr.mxu0 0.0
    %2192 = vmatpush1.msra.mxu0 0.0
    %2193 = vmatprep.subr.mxu0 0.0
    %2194 = vmatpush1.msra.mxu0 0.0
    %2195 = vmatprep.subr.mxu0 0.0
    %2196 = vmatpush1.msra.mxu0 0.0
    %2197 = vmatprep.subr.mxu0 0.0
    %2198 = vmatpush1.msra.mxu0 0.0
    %2199 = vmatprep.mubr.f32.mxu0 0.0
    %2200 = vmatmul.mubr.f32.gmra.mrb[0].mxu0 %v2133
    %v2201 = vpop.f32.mrb[0].mxu0
    %v2202 = vadd.f32 %v2129, %v2201
    %v2203 = vpop.f32.mrb[0].mxu0
    %2204 = vdwg.mxu0
    %vm2205 = vcmask 9216
    %2206 = vst.msk [vmem:[#allocation8] sm:$0x3] %vm2205, %v2202
    // Predicated region
    $region30: #{model_1_forward.1} parent=1 // pred_check
      _
    $region31: #{model_1_forward.1} parent=1 // pred_check_branch
      %2208 = sbr.rel (0) target = $region33
    $region32: #{model_1_forward.1} parent=1 // pred_region
      %s2210 = ssub.s32 32, 32
      %2211 = vsyncadd [#allocation7], %s2210
      %s2213 = sshll.u32 [#allocation8], 4
      %s2214 = int_to_ptr.vmem [resolvable:$true] %s2213
      %2216 = dma.vmem_to_hbm [thread:$0]  %s2214, 32, %s6, [#allocation7]
    $region33: #{model_1_forward.1} parent=1 // pred_fallthru
      _
    // Predicated region
    $region34: #{model_1_forward.1} parent=1 // pred_check
      _
    $region35: #{model_1_forward.1} parent=1 // pred_check_branch
      %2218 = sbr.rel (0) target = $region37
    $region36: #{model_1_forward.1} parent=1 // pred_region
      %2219 = dma.done [#allocation7], 32
    $region37: #{model_1_forward.1} parent=1 // pred_fallthru
      _
    %2220 = vsyncpa [#allocation6], 1
    %2221 = vsyncpa [#allocation7], 1
  %2222 = vsyncmov [#allocation4]
  %s2223 = vpop.sfrf %2222
  %p2224 = scmp.eq.s32.totalorder %s2223, 0
  %p2225 = pneg %p2224
  %2227 = shalt.err (%p2225)
  %s2228 = scalar_lea.sflag [#allocation4], 1
  %2229 = vsyncmov %s2228
  %s2230 = vpop.sfrf %2229
  %p2231 = scmp.eq.s32.totalorder %s2230, 0
  %p2232 = pneg %p2231
  %2234 = shalt.err (%p2232)

</llo_original>
